<compile_context>
chip_gen: v6e
topology: v6e:2x2x1
jax: 0.10.0
libtpu: 0.0.40
codegen_flags: <defaults>
</compile_context>

<pallas_src>
import math
import functools

import jax
import jax.numpy as jnp
import numpy as np
from jax.experimental import pallas as pl
from jax.experimental.pallas import tpu as pltpu


# ----------------------------------------------------------------------------
# YaRN parameter setup (matches the PyTorch __init__ / yarn() / resonance math)
# ----------------------------------------------------------------------------
def _find_correction_dim(num_rotations, dim, base, max_position_embeddings):
    return (dim * math.log(max_position_embeddings / (num_rotations * 2 * math.pi))
            / (2 * math.log(base)))


def _find_correction_range(low_rot, high_rot, dim, base, max_position_embeddings):
    low = math.floor(_find_correction_dim(low_rot, dim, base, max_position_embeddings))
    high = math.ceil(_find_correction_dim(high_rot, dim, base, max_position_embeddings))
    return (max(low, 0), min(high, dim - 1))


def _get_mscale(scale=1):
    if scale <= 1:
        return 1.0
    return 0.1 * math.log(scale) + 1.0


def _linear_ramp_mask(lo, hi, dim):
    if lo == hi:
        hi += 0.001
    linear = (np.arange(dim, dtype=np.float32) - lo) / (hi - lo)
    return np.clip(linear, 0.0, 1.0)


def make_yarn_resonance_params(dim,
                               base=10000,
                               scale=1,
                               original_max_position_embeddings=2048,
                               extrapolation_factor=1,
                               attn_factor=1,
                               beta_fast=32,
                               beta_slow=1):
    """Returns (r_inv_freq[dim//2], r_wavelengths[dim//2], mscale) as numpy f32."""
    pos_freqs = base ** (np.arange(0, dim, 2, dtype=np.float32) / dim)
    inv_freq_extrapolation = 1.0 / pos_freqs
    inv_freq_interpolation = 1.0 / (scale * pos_freqs)

    low, high = _find_correction_range(beta_fast, beta_slow, dim, base,
                                       original_max_position_embeddings)
    inv_freq_mask = (1.0 - _linear_ramp_mask(low, high, dim // 2)) * extrapolation_factor
    inv_freq = (inv_freq_interpolation * (1.0 - inv_freq_mask)
                + inv_freq_extrapolation * inv_freq_mask).astype(np.float32)

    # resonance_register: integer-valued wavelengths, exact in f32 (< 2**24)
    r_wavelengths = np.round(2.0 * math.pi / inv_freq).astype(np.float32)
    r_inv_freq = (2.0 * math.pi / r_wavelengths).astype(np.float32)
    mscale = float(_get_mscale(scale) * attn_factor)
    return r_inv_freq, r_wavelengths, mscale


# ----------------------------------------------------------------------------
# Pallas kernel
#   For row t (absolute seq position) and lane j of the packed slab:
#     base angle = (t mod w[j]) * inv_freq[j]
#     out[:, :H]  = cos(angle)            * mscale
#     out[:, H:]  = cos(angle - pi/2)     * mscale   (== sin(angle) * mscale)
# ----------------------------------------------------------------------------
def _yarn_resonance_kernel(inv_freq_ref, wav_ref, inv_wav_ref, out_ref, *,
                           mscale, tile_s, dim_half):
    i = pl.program_id(0)
    shape = out_ref.shape  # (tile_s, 2 * dim_half)

    # Absolute position per row; exact in int32 then f32 (positions < 2**23).
    t = (jax.lax.broadcasted_iota(jnp.int32, shape, 0) + i * tile_s).astype(jnp.float32)

    inv_f = inv_freq_ref[...]   # (1, 2H) f32
    w = wav_ref[...]            # (1, 2H) integer-valued f32
    inv_w = inv_wav_ref[...]    # (1, 2H) f32, 1/w

    # Float "mod": r = t - w * floor(t * (1/w)).  The floor can be off by one
    # when t is an exact multiple of w (f32 rounding of t*(1/w)); the two
    # cheap select guards restore the exact integer remainder.
    q = jnp.floor(t * inv_w)
    r = t - q * w
    r = jnp.where(r < 0.0, r + w, r)
    r = jnp.where(r >= w, r - w, r)

    # Lane-packed phase: right half shifted by -pi/2 so a single cos yields sin.
    lane = jax.lax.broadcasted_iota(jnp.int32, shape, 1)
    phase = jnp.where(lane >= dim_half,
                      jnp.float32(-0.5 * math.pi), jnp.float32(0.0))
    angle = r * inv_f + phase

    out_ref[...] = (jnp.cos(angle) * mscale).astype(out_ref.dtype)


def _pick_tile_rows(seq_len):
    """Fixed large row tile; >=2 grid steps whenever seq_len > 8."""
    if seq_len <= 8:
        return seq_len                      # single full-array block (legal)
    half_rounded = (((seq_len + 1) // 2) + 7) // 8 * 8   # sublane-aligned half
    return min(1024, half_rounded)


def yarn_resonance_rotary_embedding(x, seq_len, *, dim,
                                    max_position_embeddings=2048,
                                    base=10000, scale=1,
                                    original_max_position_embeddings=2048,
                                    extrapolation_factor=1, attn_factor=1,
                                    beta_fast=32, beta_slow=1):
    """Equivalent of module.forward(x, seq_len).

    Returns (cos, sin), each of shape [1, 1, seq_len, dim // 2], dtype == x.dtype.
    (The PyTorch cache/recompute logic collapses to "compute the first seq_len
    rows", which is what we do functionally every call.)
    """
    dim_half = dim // 2
    two_h = 2 * dim_half

    r_inv_freq, r_wavelengths, mscale = make_yarn_resonance_params(
        dim, base, scale, original_max_position_embeddings,
        extrapolation_factor, attn_factor, beta_fast, beta_slow)

    inv_wav = (np.float32(1.0) / r_wavelengths).astype(np.float32)

    # Lane-packed (duplicated) parameter rows, shape (1, 2*dim_half).
    inv_freq_packed = jnp.asarray(
        np.concatenate([r_inv_freq, r_inv_freq]).reshape(1, two_h))
    wav_packed = jnp.asarray(
        np.concatenate([r_wavelengths, r_wavelengths]).reshape(1, two_h))
    inv_wav_packed = jnp.asarray(
        np.concatenate([inv_wav, inv_wav]).reshape(1, two_h))

    tile_s = _pick_tile_rows(seq_len)
    grid = (pl.cdiv(seq_len, tile_s),)

    kernel = functools.partial(_yarn_resonance_kernel, mscale=mscale,
                               tile_s=tile_s, dim_half=dim_half)

    out_dtype = x.dtype
    slab = pl.pallas_call(
        kernel,
        out_shape=jax.ShapeDtypeStruct((seq_len, two_h), out_dtype),
        grid_spec=pltpu.PrefetchScalarGridSpec(
            num_scalar_prefetch=0,
            grid=grid,
            in_specs=[
                pl.BlockSpec((1, two_h), lambda i: (0, 0)),
                pl.BlockSpec((1, two_h), lambda i: (0, 0)),
                pl.BlockSpec((1, two_h), lambda i: (0, 0)),
            ],
            out_specs=pl.BlockSpec((tile_s, two_h), lambda i: (i, 0)),
        ),
        compiler_params=pltpu.CompilerParams(dimension_semantics=("parallel",)),
    )(inv_freq_packed, wav_packed, inv_wav_packed)

    cos2d = slab[:, :dim_half]
    sin2d = slab[:, dim_half:]
    # PyTorch buffer layout: [None, None, :, :] -> [1, 1, seq_len, dim//2]
    return cos2d[None, None, :, :], sin2d[None, None, :, :]


# ----------------------------------------------------------------------------
# Pure-numpy reference mirroring the PyTorch compute_freqs() exactly
# ----------------------------------------------------------------------------
def _reference(seq_len, dim, **kw):
    r_inv_freq, r_wav, mscale = make_yarn_resonance_params(dim, **kw)
    cols = []
    for i in range(dim // 2):
        w = int(r_wav[i])
        if seq_len >= w:
            t_i = np.arange(w, dtype=np.float32)
            col = np.tile(t_i * r_inv_freq[i], int(math.ceil(seq_len / w)))[:seq_len]
        else:
            t_i = np.arange(seq_len, dtype=np.float32)
            col = t_i * r_inv_freq[i]
        cols.append(col)
    freqs = np.stack(cols, axis=1)
    return (np.cos(freqs) * mscale)[None, None], (np.sin(freqs) * mscale)[None, None]


if __name__ == "__main__":
    # small, self-consistent config
    dim = 64
    seq_len = 256
    cfg = dict(base=10000, scale=4,
               original_max_position_embeddings=128,
               extrapolation_factor=1, attn_factor=1,
               beta_fast=32, beta_slow=1)

    key = jax.random.PRNGKey(0)
    # x only supplies dtype in the original forward; give it a realistic shape
    x = jax.random.normal(key, (2, 4, seq_len, dim), dtype=jnp.float32)

    cos, sin = yarn_resonance_rotary_embedding(
        x, seq_len, dim=dim, max_position_embeddings=seq_len, **cfg)
    cos = jax.block_until_ready(cos)
    sin = jax.block_until_ready(sin)

    assert cos.shape == (1, 1, seq_len, dim // 2) and cos.dtype == x.dtype
    assert sin.shape == (1, 1, seq_len, dim // 2) and sin.dtype == x.dtype

    ref_cos, ref_sin = _reference(seq_len, dim, **cfg)
    np.testing.assert_allclose(np.asarray(cos), ref_cos, atol=2e-5, rtol=2e-5)
    np.testing.assert_allclose(np.asarray(sin), ref_sin, atol=2e-5, rtol=2e-5)

    print("KERNEL_OK")
</pallas_src>

<mosaic_0001>
module attributes {stable_mosaic.version = 11 : i64} {
  func.func @_yarn_resonance_kernel(%arg0: i32, %arg1: memref<1x64xf32, #tpu.memory_space<vmem>>, %arg2: memref<1x64xf32, #tpu.memory_space<vmem>>, %arg3: memref<1x64xf32, #tpu.memory_space<vmem>>, %arg4: memref<128x64xf32, #tpu.memory_space<vmem>>) attributes {dimension_semantics = [#tpu.dimension_semantics<parallel>], iteration_bounds = array<i64: 2>, scalar_prefetch = 0 : i64, scratch_operands = 0 : i64, tpu.core_type = #tpu.core_type<tc>, window_params = [{pipeline_mode = #tpu.pipeline_mode<synchronous>, transform_indices = @transform_0, window_bounds = array<i64: 1, 64>}, {pipeline_mode = #tpu.pipeline_mode<synchronous>, transform_indices = @transform_1, window_bounds = array<i64: 1, 64>}, {pipeline_mode = #tpu.pipeline_mode<synchronous>, transform_indices = @transform_2, window_bounds = array<i64: 1, 64>}, {transform_indices = @transform_3, window_bounds = array<i64: 128, 64>}]} {
    %0 = tpu.iota {dimensions = array<i32: 0>} : vector<128x64xi32>
    %c128_i32 = arith.constant 128 : i32
    %1 = arith.muli %arg0, %c128_i32 : i32
    %2 = vector.broadcast %1 : i32 to vector<128x64xi32>
    %3 = arith.addi %0, %2 : vector<128x64xi32>
    %4 = arith.sitofp %3 : vector<128x64xi32> to vector<128x64xf32>
    %c0 = arith.constant 0 : index
    %c0_0 = arith.constant 0 : index
    %5 = vector.load %arg1[%c0, %c0_0] : memref<1x64xf32, #tpu.memory_space<vmem>>, vector<1x64xf32>
    %c0_1 = arith.constant 0 : index
    %c0_2 = arith.constant 0 : index
    %6 = vector.load %arg2[%c0_1, %c0_2] : memref<1x64xf32, #tpu.memory_space<vmem>>, vector<1x64xf32>
    %c0_3 = arith.constant 0 : index
    %c0_4 = arith.constant 0 : index
    %7 = vector.load %arg3[%c0_3, %c0_4] : memref<1x64xf32, #tpu.memory_space<vmem>>, vector<1x64xf32>
    %8 = vector.broadcast %7 : vector<1x64xf32> to vector<128x64xf32>
    %9 = arith.mulf %4, %8 : vector<128x64xf32>
    %10 = math.floor %9 : vector<128x64xf32>
    %11 = vector.broadcast %6 : vector<1x64xf32> to vector<128x64xf32>
    %12 = arith.mulf %10, %11 : vector<128x64xf32>
    %13 = arith.subf %4, %12 : vector<128x64xf32>
    %cst = arith.constant 0.000000e+00 : f32
    %14 = vector.broadcast %cst : f32 to vector<128x64xf32>
    %15 = arith.cmpf olt, %13, %14 : vector<128x64xf32>
    %16 = vector.broadcast %6 : vector<1x64xf32> to vector<128x64xf32>
    %17 = arith.addf %13, %16 : vector<128x64xf32>
    %18 = arith.select %15, %17, %13 : vector<128x64xi1>, vector<128x64xf32>
    %19 = vector.broadcast %6 : vector<1x64xf32> to vector<128x64xf32>
    %20 = arith.cmpf oge, %18, %19 : vector<128x64xf32>
    %21 = vector.broadcast %6 : vector<1x64xf32> to vector<128x64xf32>
    %22 = arith.subf %18, %21 : vector<128x64xf32>
    %23 = arith.select %20, %22, %18 : vector<128x64xi1>, vector<128x64xf32>
    %24 = tpu.iota {dimensions = array<i32: 1>} : vector<128x64xi32>
    %c32_i32 = arith.constant 32 : i32
    %25 = vector.broadcast %c32_i32 : i32 to vector<128x64xi32>
    %26 = arith.cmpi sge, %24, %25 : vector<128x64xi32>
    %cst_5 = arith.constant -1.57079637 : f32
    %cst_6 = arith.constant 0.000000e+00 : f32
    %27 = vector.broadcast %cst_5 : f32 to vector<128x64xf32>
    %28 = vector.broadcast %cst_6 : f32 to vector<128x64xf32>
    %29 = arith.select %26, %27, %28 : vector<128x64xi1>, vector<128x64xf32>
    %30 = vector.broadcast %5 : vector<1x64xf32> to vector<128x64xf32>
    %31 = arith.mulf %23, %30 : vector<128x64xf32>
    %32 = arith.addf %31, %29 : vector<128x64xf32>
    %33 = math.cos %32 : vector<128x64xf32>
    %cst_7 = arith.constant 1.13862944 : f32
    %34 = vector.broadcast %cst_7 : f32 to vector<128x64xf32>
    %35 = arith.mulf %33, %34 : vector<128x64xf32>
    %c0_8 = arith.constant 0 : index
    %c0_9 = arith.constant 0 : index
    %36 = vector.load %arg4[%c0_8, %c0_9] : memref<128x64xf32, #tpu.memory_space<vmem>>, vector<128x64xf32>
    tpu.vector_store %arg4[%c0_8, %c0_9], %35 {strides = array<i32>} : memref<128x64xf32, #tpu.memory_space<vmem>>, vector<128x64xf32>,
    return
  }
  func.func @transform_0(%arg0: i32) -> (i32, i32) {
    %c0_i32 = arith.constant 0 : i32
    %c0_i32_0 = arith.constant 0 : i32
    %c0_i32_1 = arith.constant 0 : i32
    return %c0_i32, %c0_i32_0 : i32, i32
  }
  func.func @transform_1(%arg0: i32) -> (i32, i32) {
    %c0_i32 = arith.constant 0 : i32
    %c0_i32_0 = arith.constant 0 : i32
    %c0_i32_1 = arith.constant 0 : i32
    return %c0_i32, %c0_i32_0 : i32, i32
  }
  func.func @transform_2(%arg0: i32) -> (i32, i32) {
    %c0_i32 = arith.constant 0 : i32
    %c0_i32_0 = arith.constant 0 : i32
    %c0_i32_1 = arith.constant 0 : i32
    return %c0_i32, %c0_i32_0 : i32, i32
  }
  func.func @transform_3(%arg0: i32) -> (i32, i32) {
    %c0_i32 = arith.constant 0 : i32
    %c0_i32_0 = arith.constant 0 : i32
    return %arg0, %c0_i32 : i32, i32
  }
}

</mosaic_0001>

<llo_original>
// kernel: tpu_custom_call.1
$region0: #{tpu_custom_call.1}
  #allocation0 [shape = 'u32[]', space=smem, size = 0x4, offset = 0x4, fixed_abs, tag = 'smem constant byte address 0x4 - core index']
  #allocation1 [shape = 'u32[144,128]{1,0:T(1,128)}', space=vmem, size = 0x12000, scoped, tag = 'internal scratch']
  %s0 = inlined_call_operand.hbm [shape: f32[1,64], index: 0, kind: input, shape index: {}]
  %s1 = inlined_call_operand.vmem [shape: f32[1,64], index: 1, kind: input, shape index: {}]
  %s2 = inlined_call_operand.vmem [shape: f32[1,64], index: 2, kind: input, shape index: {}]
  %s3 = inlined_call_operand.vmem [shape: f32[256,64], index: 3, kind: output, shape index: {}]
  %s4 = sld [smem:[#allocation0]]
  $region49: #{tpu_custom_call.1} parent=0
    _
  %s6 = ssub.s32 1, %s4
  %s7 = scalar_select 0, %s6, %s4
  $region1: #{tpu_custom_call.1} parent=0
    #allocation2 [shape = 'u8[512]{0}', space=vmem, size = 0x400, scoped, tag = 'input window, operand 0, single buffered']
    #allocation3 [shape = 's32[2]{0}', space=sflag, size = 0x8, scoped, tag = 'scoped memory for tpu_custom_call.1']
    %8 = vsyncpa [#allocation3], 0
    loop: start=0, step=1, limit=4
    $region2: #{tpu_custom_call.1} parent=1 // loop_pre_header
      _
    $region3: #{tpu_custom_call.1} parent=1 // loop_header
      %s10 = sphi 0, %s14
      %p11 = scmp.ge.s32.totalorder %s10, 4
      %s18 = sphi 0, %s18
      %s20 = sphi 0, %s18
      %s21 = sphi 0, %s20
      %s35 = sphi 0, %s21
      %s39 = sphi 0, %s39
      %s41 = sphi 0, %s39
      %s42 = sphi 0, %s41
      %s56 = sphi 0, %s42
      %s60 = sphi 0, %s60
      %s62 = sphi 0, %s60
      %s63 = sphi 0, %s62
      %s77 = sphi 0, %s63
      %s83 = sphi 0, %s85
      %s86 = sphi 0, %s83
      %s87 = sphi 0, %s86
      %s103 = sphi 0, %s87
    $region4: #{tpu_custom_call.1} parent=1 // loop_header_branch
      %13 = sbr.rel (%p11) target = $region8
    $region5: #{tpu_custom_call.1} parent=1 // loop_body
      %s15 = ssub.s32 %s10, 1
      %s16 = ssub.s32 %s10, 2
      %s17 = sadd.s32 %s10, 1
      %s19 = sadd.s32 %s18, 1
      %p22 = scmp.eq.s32.totalorder %s10, 1
      %p23 = scmp.ne.s32.totalorder %s18, %s20
      %p24 = scmp.eq.s32.totalorder %s10, 0
      %p25 = por %p23, %p24
      %p26 = scmp.ne.s32.totalorder %s18, %s20
      %p27 = scmp.eq.s32.totalorder %s15, 1
      %p28 = por %p26, %p27
      %p29 = scmp.ne.s32.totalorder %s20, %s21
      %p30 = scmp.eq.s32.totalorder %s15, 0
      %p31 = por %p29, %p30
      %p32 = scmp.ne.s32.totalorder %s20, %s21
      %p33 = scmp.eq.s32.totalorder %s16, 1
      %p34 = por %p32, %p33
      %p36 = scmp.ne.s32.totalorder %s21, %s35
      %p37 = scmp.eq.s32.totalorder %s16, 0
      %p38 = por %p36, %p37
      %s40 = sadd.s32 %s39, 1
      %p43 = scmp.eq.s32.totalorder %s10, 1
      %p44 = scmp.ne.s32.totalorder %s39, %s41
      %p45 = scmp.eq.s32.totalorder %s10, 0
      %p46 = por %p44, %p45
      %p47 = scmp.ne.s32.totalorder %s39, %s41
      %p48 = scmp.eq.s32.totalorder %s15, 1
      %p49 = por %p47, %p48
      %p50 = scmp.ne.s32.totalorder %s41, %s42
      %p51 = scmp.eq.s32.totalorder %s15, 0
      %p52 = por %p50, %p51
      %p53 = scmp.ne.s32.totalorder %s41, %s42
      %p54 = scmp.eq.s32.totalorder %s16, 1
      %p55 = por %p53, %p54
      %p57 = scmp.ne.s32.totalorder %s42, %s56
      %p58 = scmp.eq.s32.totalorder %s16, 0
      %p59 = por %p57, %p58
      %s61 = sadd.s32 %s60, 1
      %p64 = scmp.eq.s32.totalorder %s10, 1
      %p65 = scmp.ne.s32.totalorder %s60, %s62
      %p66 = scmp.eq.s32.totalorder %s10, 0
      %p67 = por %p65, %p66
      %p68 = scmp.ne.s32.totalorder %s60, %s62
      %p69 = scmp.eq.s32.totalorder %s15, 1
      %p70 = por %p68, %p69
      %p71 = scmp.ne.s32.totalorder %s62, %s63
      %p72 = scmp.eq.s32.totalorder %s15, 0
      %p73 = por %p71, %p72
      %p74 = scmp.ne.s32.totalorder %s62, %s63
      %p75 = scmp.eq.s32.totalorder %s16, 1
      %p76 = por %p74, %p75
      %p78 = scmp.ne.s32.totalorder %s63, %s77
      %p79 = scmp.eq.s32.totalorder %s16, 0
      %p80 = por %p78, %p79
      %s81 = ssub.s32 %s10, %s17
      %p82 = scmp.eq.s32.totalorder %s81, 0
      %s84 = sadd.s32 %s83, 1
      %s85 = scalar_select %p82, %s83, %s84
      %p88 = pneg %p82
      %p89 = scmp.eq.s32.totalorder %s10, 1
      %p90 = por %p88, %p89
      %p91 = scmp.ne.s32.totalorder %s83, %s86
      %p92 = scmp.eq.s32.totalorder %s10, 0
      %p93 = por %p91, %p92
      %p94 = scmp.ne.s32.totalorder %s83, %s86
      %p95 = scmp.eq.s32.totalorder %s15, 1
      %p96 = por %p94, %p95
      %p97 = scmp.ne.s32.totalorder %s86, %s87
      %p98 = scmp.eq.s32.totalorder %s15, 0
      %p99 = por %p97, %p98
      %p100 = scmp.ne.s32.totalorder %s86, %s87
      %p101 = scmp.eq.s32.totalorder %s16, 1
      %p102 = por %p100, %p101
      %p104 = scmp.ne.s32.totalorder %s87, %s103
      %p105 = scmp.eq.s32.totalorder %s16, 0
      %p106 = por %p104, %p105
      %p107 = scmp.le.s32.totalorder 1, %s10
      %p108 = scmp.lt.s32.totalorder %s10, 3
      %p109 = pnand %p107, %p108
      %p110 = pneg %p109
      // Predicated region
      $region9: #{tpu_custom_call.1} parent=5 // pred_check
        _
      $region10: #{tpu_custom_call.1} parent=5 // pred_check_branch
        %112 = sbr.rel (%p109) target = $region12
      $region11: #{tpu_custom_call.1} parent=5 // pred_region
        %s113 = ssub.s32 %s10, 1
        // Predicated region
        $region13: #{tpu_custom_call.1} parent=11 // pred_check
          %p114 = pneg %p31
        $region14: #{tpu_custom_call.1} parent=11 // pred_check_branch
          %116 = sbr.rel (%p114) target = $region16
        $region15: #{tpu_custom_call.1} parent=11 // pred_region
          %s118 = ssub.s32 16, 16
          %119 = vsyncadd [#allocation3], %s118
          %s121 = sshll.u32 [#allocation2], 4
          %s122 = int_to_ptr.vmem [resolvable:$true] %s121
          %124 = dma.hbm_to_vmem [thread:$0]  %s0, 16, %s122, [#allocation3]
        $region16: #{tpu_custom_call.1} parent=11 // pred_fallthru
          _
        // Predicated region
        $region17: #{tpu_custom_call.1} parent=11 // pred_check
          %p125 = pneg %p52
        $region18: #{tpu_custom_call.1} parent=11 // pred_check_branch
          %127 = sbr.rel (%p125) target = $region20
        $region19: #{tpu_custom_call.1} parent=11 // pred_region
          _
        $region20: #{tpu_custom_call.1} parent=11 // pred_fallthru
          _
        // Predicated region
        $region21: #{tpu_custom_call.1} parent=11 // pred_check
          %p128 = pneg %p73
        $region22: #{tpu_custom_call.1} parent=11 // pred_check_branch
          %130 = sbr.rel (%p128) target = $region24
        $region23: #{tpu_custom_call.1} parent=11 // pred_region
          _
        $region24: #{tpu_custom_call.1} parent=11 // pred_fallthru
          _
      $region12: #{tpu_custom_call.1} parent=5 // pred_fallthru
        _
      %p131 = scmp.lt.s32.totalorder %s10, 2
      // Predicated region
      $region25: #{tpu_custom_call.1} parent=5 // pred_check
        %p132 = pneg %p131
      $region26: #{tpu_custom_call.1} parent=5 // pred_check_branch
        %134 = sbr.rel (%p132) target = $region28
      $region27: #{tpu_custom_call.1} parent=5 // pred_region
        _
      $region28: #{tpu_custom_call.1} parent=5 // pred_fallthru
        _
      %p135 = scmp.le.s32.totalorder 1, %s10
      %p136 = scmp.lt.s32.totalorder %s10, 3
      %p137 = pnand %p135, %p136
      %p138 = pneg %p137
      // Predicated region
      $region29: #{tpu_custom_call.1} parent=5 // pred_check
        _
      $region30: #{tpu_custom_call.1} parent=5 // pred_check_branch
        %140 = sbr.rel (%p137) target = $region32
      $region31: #{tpu_custom_call.1} parent=5 // pred_region
        %s141 = ssub.s32 %s10, 1
        // Predicated region
        $region33: #{tpu_custom_call.1} parent=31 // pred_check
          %p142 = pneg %p31
        $region34: #{tpu_custom_call.1} parent=31 // pred_check_branch
          %144 = sbr.rel (%p142) target = $region36
        $region35: #{tpu_custom_call.1} parent=31 // pred_region
          %145 = dma.done [#allocation3], 16
        $region36: #{tpu_custom_call.1} parent=31 // pred_fallthru
          _
        %p146 = pneg %p31
        %p147 = pneg %p28
        %p148 = pneg %p52
        %p149 = pneg %p49
        %p150 = pneg %p73
        %p151 = pneg %p70
        %p152 = pneg %p99
        %p153 = pneg %p96
        %s154 = smul.u32 16, %s15
        %p155 = scmp.lt.s32.totalorder %s154, 31
        %s156 = scalar_select %p155, %s154, 31
        %s157 = smul.addr %s156, 8
        %s158 = scalar_lea.vmem %s3, %s157
        %s159 = smul.u32 16, %s15
        %p160 = scmp.lt.s32.totalorder %s159, 31
        %s161 = scalar_select %p160, %s159, 31
        %s162 = smul.addr %s161, 8
        %s163 = scalar_lea.vmem %s3, %s162
        %s164 = smul.u32 16, %s15
        %v165 = vlaneseq
        %v166 = vshrl.u32 %v165, 7
        %v167 = vadd.s32 %v166, 8
        %v168 = vadd.s32 %v166, 16
        %v169 = vadd.s32 %v166, 24
        %v170 = vadd.s32 %v166, 32
        %v171 = vadd.s32 %v166, 40
        %v172 = vadd.s32 %v166, 48
        %v173 = vadd.s32 %v166, 56
        %v174 = vadd.s32 %v166, 64
        %v175 = vadd.s32 %v166, 72
        %v176 = vadd.s32 %v166, 80
        %v177 = vadd.s32 %v166, 88
        %v178 = vadd.s32 %v166, 96
        %v179 = vadd.s32 %v166, 104
        %v180 = vadd.s32 %v166, 112
        %v181 = vadd.s32 %v166, 120
        %s182 = smul.u32 %s15, 128
        %v183 = vstv %s182
        %v184 = vadd.s32 %v166, %v183
        %v185 = vadd.s32 %v167, %v183
        %v186 = vadd.s32 %v168, %v183
        %v187 = vadd.s32 %v169, %v183
        %v188 = vadd.s32 %v170, %v183
        %v189 = vadd.s32 %v171, %v183
        %v190 = vadd.s32 %v172, %v183
        %v191 = vadd.s32 %v173, %v183
        %v192 = vadd.s32 %v174, %v183
        %v193 = vadd.s32 %v175, %v183
        %v194 = vadd.s32 %v176, %v183
        %v195 = vadd.s32 %v177, %v183
        %v196 = vadd.s32 %v178, %v183
        %v197 = vadd.s32 %v179, %v183
        %v198 = vadd.s32 %v180, %v183
        %v199 = vadd.s32 %v181, %v183
        %v200 = vcvt.s32.f32 %v184
        %v201 = vcvt.s32.f32 %v185
        %v202 = vcvt.s32.f32 %v186
        %v203 = vcvt.s32.f32 %v187
        %v204 = vcvt.s32.f32 %v188
        %v205 = vcvt.s32.f32 %v189
        %v206 = vcvt.s32.f32 %v190
        %v207 = vcvt.s32.f32 %v191
        %v208 = vcvt.s32.f32 %v192
        %v209 = vcvt.s32.f32 %v193
        %v210 = vcvt.s32.f32 %v194
        %v211 = vcvt.s32.f32 %v195
        %v212 = vcvt.s32.f32 %v196
        %v213 = vcvt.s32.f32 %v197
        %v214 = vcvt.s32.f32 %v198
        %v215 = vcvt.s32.f32 %v199
        %v216 = vld [vmem:[#allocation2] sm:$0x1]
        %v217 = vld [vmem:[%s1] sm:$0x1]
        %v218 = vld [vmem:[%s2] sm:$0x1]
        %v220 = vlaneseq
        %v221 = vshrl.u32 %v220, 7
        %v222 = vsub.s32 0, %v221
        %v223 = vrot.slane %v218, %v222
        %v225 = vmul.f32 %v200, %v223
        %v226 = vmul.f32 %v201, %v223
        %v227 = vmul.f32 %v202, %v223
        %v228 = vmul.f32 %v203, %v223
        %v229 = vmul.f32 %v204, %v223
        %v230 = vmul.f32 %v205, %v223
        %v231 = vmul.f32 %v206, %v223
        %v232 = vmul.f32 %v207, %v223
        %v233 = vmul.f32 %v208, %v223
        %v234 = vmul.f32 %v209, %v223
        %v235 = vmul.f32 %v210, %v223
        %v236 = vmul.f32 %v211, %v223
        %v237 = vmul.f32 %v212, %v223
        %v238 = vmul.f32 %v213, %v223
        %v239 = vmul.f32 %v214, %v223
        %v240 = vmul.f32 %v215, %v223
        %v241 = vfloor.f32 %v225
        %v242 = vfloor.f32 %v226
        %v243 = vfloor.f32 %v227
        %v244 = vfloor.f32 %v228
        %v245 = vfloor.f32 %v229
        %v246 = vfloor.f32 %v230
        %v247 = vfloor.f32 %v231
        %v248 = vfloor.f32 %v232
        %v249 = vfloor.f32 %v233
        %v250 = vfloor.f32 %v234
        %v251 = vfloor.f32 %v235
        %v252 = vfloor.f32 %v236
        %v253 = vfloor.f32 %v237
        %v254 = vfloor.f32 %v238
        %v255 = vfloor.f32 %v239
        %v256 = vfloor.f32 %v240
        %v258 = vlaneseq
        %v259 = vshrl.u32 %v258, 7
        %v260 = vsub.s32 0, %v259
        %v261 = vrot.slane %v217, %v260
        %v263 = vmul.f32 %v241, %v261
        %v264 = vmul.f32 %v242, %v261
        %v265 = vmul.f32 %v243, %v261
        %v266 = vmul.f32 %v244, %v261
        %v267 = vmul.f32 %v245, %v261
        %v268 = vmul.f32 %v246, %v261
        %v269 = vmul.f32 %v247, %v261
        %v270 = vmul.f32 %v248, %v261
        %v271 = vmul.f32 %v249, %v261
        %v272 = vmul.f32 %v250, %v261
        %v273 = vmul.f32 %v251, %v261
        %v274 = vmul.f32 %v252, %v261
        %v275 = vmul.f32 %v253, %v261
        %v276 = vmul.f32 %v254, %v261
        %v277 = vmul.f32 %v255, %v261
        %v278 = vmul.f32 %v256, %v261
        %v279 = vsub.f32 %v200, %v263
        %v280 = vsub.f32 %v201, %v264
        %v281 = vsub.f32 %v202, %v265
        %v282 = vsub.f32 %v203, %v266
        %v283 = vsub.f32 %v204, %v267
        %v284 = vsub.f32 %v205, %v268
        %v285 = vsub.f32 %v206, %v269
        %v286 = vsub.f32 %v207, %v270
        %v287 = vsub.f32 %v208, %v271
        %v288 = vsub.f32 %v209, %v272
        %v289 = vsub.f32 %v210, %v273
        %v290 = vsub.f32 %v211, %v274
        %v291 = vsub.f32 %v212, %v275
        %v292 = vsub.f32 %v213, %v276
        %v293 = vsub.f32 %v214, %v277
        %v294 = vsub.f32 %v215, %v278
        %vm295 = vcmp.lt.f32.partialorder %v279, 0.0
        %vm296 = vcmp.lt.f32.partialorder %v280, 0.0
        %vm297 = vcmp.lt.f32.partialorder %v281, 0.0
        %vm298 = vcmp.lt.f32.partialorder %v282, 0.0
        %vm299 = vcmp.lt.f32.partialorder %v283, 0.0
        %vm300 = vcmp.lt.f32.partialorder %v284, 0.0
        %vm301 = vcmp.lt.f32.partialorder %v285, 0.0
        %vm302 = vcmp.lt.f32.partialorder %v286, 0.0
        %vm303 = vcmp.lt.f32.partialorder %v287, 0.0
        %vm304 = vcmp.lt.f32.partialorder %v288, 0.0
        %vm305 = vcmp.lt.f32.partialorder %v289, 0.0
        %vm306 = vcmp.lt.f32.partialorder %v290, 0.0
        %vm307 = vcmp.lt.f32.partialorder %v291, 0.0
        %vm308 = vcmp.lt.f32.partialorder %v292, 0.0
        %vm309 = vcmp.lt.f32.partialorder %v293, 0.0
        %vm310 = vcmp.lt.f32.partialorder %v294, 0.0
        %v311 = vadd.f32 %v279, %v261
        %v312 = vadd.f32 %v280, %v261
        %v313 = vadd.f32 %v281, %v261
        %v314 = vadd.f32 %v282, %v261
        %v315 = vadd.f32 %v283, %v261
        %v316 = vadd.f32 %v284, %v261
        %v317 = vadd.f32 %v285, %v261
        %v318 = vadd.f32 %v286, %v261
        %v319 = vadd.f32 %v287, %v261
        %v320 = vadd.f32 %v288, %v261
        %v321 = vadd.f32 %v289, %v261
        %v322 = vadd.f32 %v290, %v261
        %v323 = vadd.f32 %v291, %v261
        %v324 = vadd.f32 %v292, %v261
        %v325 = vadd.f32 %v293, %v261
        %v326 = vadd.f32 %v294, %v261
        %v327 = vsel %vm295, %v311, %v279
        %v328 = vsel %vm296, %v312, %v280
        %v329 = vsel %vm297, %v313, %v281
        %v330 = vsel %vm298, %v314, %v282
        %v331 = vsel %vm299, %v315, %v283
        %v332 = vsel %vm300, %v316, %v284
        %v333 = vsel %vm301, %v317, %v285
        %v334 = vsel %vm302, %v318, %v286
        %v335 = vsel %vm303, %v319, %v287
        %v336 = vsel %vm304, %v320, %v288
        %v337 = vsel %vm305, %v321, %v289
        %v338 = vsel %vm306, %v322, %v290
        %v339 = vsel %vm307, %v323, %v291
        %v340 = vsel %vm308, %v324, %v292
        %v341 = vsel %vm309, %v325, %v293
        %v342 = vsel %vm310, %v326, %v294
        %vm343 = vcmp.ge.f32.partialorder %v327, %v261
        %vm344 = vcmp.ge.f32.partialorder %v328, %v261
        %vm345 = vcmp.ge.f32.partialorder %v329, %v261
        %vm346 = vcmp.ge.f32.partialorder %v330, %v261
        %vm347 = vcmp.ge.f32.partialorder %v331, %v261
        %vm348 = vcmp.ge.f32.partialorder %v332, %v261
        %vm349 = vcmp.ge.f32.partialorder %v333, %v261
        %vm350 = vcmp.ge.f32.partialorder %v334, %v261
        %vm351 = vcmp.ge.f32.partialorder %v335, %v261
        %vm352 = vcmp.ge.f32.partialorder %v336, %v261
        %vm353 = vcmp.ge.f32.partialorder %v337, %v261
        %vm354 = vcmp.ge.f32.partialorder %v338, %v261
        %vm355 = vcmp.ge.f32.partialorder %v339, %v261
        %vm356 = vcmp.ge.f32.partialorder %v340, %v261
        %vm357 = vcmp.ge.f32.partialorder %v341, %v261
        %vm358 = vcmp.ge.f32.partialorder %v342, %v261
        %v359 = vsub.f32 %v327, %v261
        %v360 = vsub.f32 %v328, %v261
        %v361 = vsub.f32 %v329, %v261
        %v362 = vsub.f32 %v330, %v261
        %v363 = vsub.f32 %v331, %v261
        %v364 = vsub.f32 %v332, %v261
        %v365 = vsub.f32 %v333, %v261
        %v366 = vsub.f32 %v334, %v261
        %v367 = vsub.f32 %v335, %v261
        %v368 = vsub.f32 %v336, %v261
        %v369 = vsub.f32 %v337, %v261
        %v370 = vsub.f32 %v338, %v261
        %v371 = vsub.f32 %v339, %v261
        %v372 = vsub.f32 %v340, %v261
        %v373 = vsub.f32 %v341, %v261
        %v374 = vsub.f32 %v342, %v261
        %v375 = vsel %vm343, %v359, %v327
        %v376 = vsel %vm344, %v360, %v328
        %v377 = vsel %vm345, %v361, %v329
        %v378 = vsel %vm346, %v362, %v330
        %v379 = vsel %vm347, %v363, %v331
        %v380 = vsel %vm348, %v364, %v332
        %v381 = vsel %vm349, %v365, %v333
        %v382 = vsel %vm350, %v366, %v334
        %v383 = vsel %vm351, %v367, %v335
        %v384 = vsel %vm352, %v368, %v336
        %v385 = vsel %vm353, %v369, %v337
        %v386 = vsel %vm354, %v370, %v338
        %v387 = vsel %vm355, %v371, %v339
        %v388 = vsel %vm356, %v372, %v340
        %v389 = vsel %vm357, %v373, %v341
        %v390 = vsel %vm358, %v374, %v342
        %v391 = vlaneseq
        %v392 = vand.u32 %v391, 127
        %vm393 = vcmp.ge.s32.totalorder %v392, 32
        %v394 = vsel %vm393, -1.5707964, 0.0
        %v396 = vlaneseq
        %v397 = vshrl.u32 %v396, 7
        %v398 = vsub.s32 0, %v397
        %v399 = vrot.slane %v216, %v398
        %v401 = vmul.f32 %v375, %v399
        %v402 = vmul.f32 %v376, %v399
        %v403 = vmul.f32 %v377, %v399
        %v404 = vmul.f32 %v378, %v399
        %v405 = vmul.f32 %v379, %v399
        %v406 = vmul.f32 %v380, %v399
        %v407 = vmul.f32 %v381, %v399
        %v408 = vmul.f32 %v382, %v399
        %v409 = vmul.f32 %v383, %v399
        %v410 = vmul.f32 %v384, %v399
        %v411 = vmul.f32 %v385, %v399
        %v412 = vmul.f32 %v386, %v399
        %v413 = vmul.f32 %v387, %v399
        %v414 = vmul.f32 %v388, %v399
        %v415 = vmul.f32 %v389, %v399
        %v416 = vmul.f32 %v390, %v399
        %v417 = vadd.f32 %v401, %v394
        %v418 = vadd.f32 %v402, %v394
        %v419 = vadd.f32 %v403, %v394
        %v420 = vadd.f32 %v404, %v394
        %v421 = vadd.f32 %v405, %v394
        %v422 = vadd.f32 %v406, %v394
        %v423 = vadd.f32 %v407, %v394
        %v424 = vadd.f32 %v408, %v394
        %v425 = vadd.f32 %v409, %v394
        %v426 = vadd.f32 %v410, %v394
        %v427 = vadd.f32 %v411, %v394
        %v428 = vadd.f32 %v412, %v394
        %v429 = vadd.f32 %v413, %v394
        %v430 = vadd.f32 %v414, %v394
        %v431 = vadd.f32 %v415, %v394
        %v432 = vadd.f32 %v416, %v394
        %v433 = vand.u32 2147483647, %v417
        %vm434 = vcmp.le.f32.partialorder %v433, 0.7853982
        %vm435 = vcmp.lt.s32.totalorder %v417, 0
        %v436 = vand.u32 %v417, 2139095040
        %v437 = vshrl.u32 %v436, 23
        %v438 = vsub.s32 %v437, 127
        %v439 = vand.u32 2147483647, %v417
        %v440 = vand.u32 %v439, 8388607
        %v441 = vor.u32 %v440, 8388608
        %v442 = vsub.s32 0, %v441
        %v443 = vadd.s32 %v438, 1
        %vm444 = vcmp.gt.s32.totalorder %v443, 0
        %v445 = vsel %vm444, %v443, 0
        %v446 = vshrl.u32 %v445, 5
        %v447 = vand.u32 %v445, 31
        %v448 = vsub.s32 32, %v447
        %v449 = vshrl.u32 683565275, %v448
        %v450 = vshll.u32 683565275, %v447
        %v451 = vshrl.u32 2475754826, %v448
        %v452 = vor.u32 %v450, %v451
        %v453 = vshll.u32 2475754826, %v447
        %v454 = vshrl.u32 2131351028, %v448
        %v455 = vor.u32 %v453, %v454
        %v456 = vshll.u32 2131351028, %v447
        %v457 = vshrl.u32 2102212464, %v448
        %v458 = vor.u32 %v456, %v457
        %v459 = vshll.u32 2102212464, %v447
        %v460 = vshrl.u32 920167782, %v448
        %v461 = vor.u32 %v459, %v460
        %v462 = vshll.u32 920167782, %v447
        %v463 = vshrl.u32 1326507024, %v448
        %v464 = vor.u32 %v462, %v463
        %vm465 = vcmp.lt.s32.totalorder %v446, 1
        %vm466 = vcmp.lt.s32.totalorder %v446, 2
        %vm467 = vcmp.lt.s32.totalorder %v446, 3
        %vm468 = vcmp.lt.s32.totalorder %v446, 4
        %v469 = vsel %vm465, %v449, %v452
        %v470 = vsel %vm468, %v458, 2102212464
        %v471 = vsel %vm467, %v455, %v470
        %v472 = vsel %vm466, %v469, %v471
        %v473 = vsel %vm465, %v452, %v455
        %v474 = vsel %vm468, %v461, 920167782
        %v475 = vsel %vm467, %v458, %v474
        %v476 = vsel %vm466, %v473, %v475
        %v477 = vsel %vm465, %v455, %v458
        %v478 = vsel %vm468, %v464, 1326507024
        %v479 = vsel %vm467, %v461, %v478
        %v480 = vsel %vm466, %v477, %v479
        %v481 = vshll.u32 %v441, 8
        %v482 = vmul.u32.u64.compose %v481, %v480
        %v483 = vextract.low.u32 %v482
        %v484 = vextract.high.u32 %v482
        %v485 = vmul.u32.u64.compose %v481, %v476
        %v486 = vextract.low.u32 %v485
        %v487 = vextract.high.u32 %v485
        %v488 = vmul.u32 %v481, %v472
        %v489 = vadd.s32 %v484, %v486
        %vm490 = vc.u32 %v484, %v486
        %v491 = vadd.s32 %v487, 1
        %v492 = vsel %vm490, %v491, %v487
        %v493 = vadd.s32 %v488, %v492
        %v494 = vadd.s32 %v493, 536870912
        %v495 = vshrl.u32 %v494, 30
        %v496 = vshll.u32 %v495, 30
        %v497 = vsub.s32 %v493, %v496
        %vm498 = vcmp.lt.s32.totalorder %v497, 0
        %v499 = vsub.s32 0, %v497
        %v500 = vsel %vm498, %v499, %v497
        %v501 = vclz %v500
        %v502 = vsub.s32 %v501, 2
        %vm503 = vcmp.gt.s32.totalorder 0, %v502
        %v504 = vsel %vm503, 0, %v502
        %v505 = vsub.s32 32, %v504
        %v506 = vshll.u32 %v497, %v504
        %v507 = vshrl.u32 %v489, %v505
        %v508 = vor.u32 %v506, %v507
        %v509 = vsub.s32 4294967266, %v504
        %v510 = vadd.s32 %v509, 127
        %v511 = vshll.u32 %v510, 23
        %v512 = vor.u32 4788187, %v511
        %v513 = vand.u32 2147483647, %v512
        %v515 = vcvt.s32.f32 %v508
        %v516 = vmul.f32 %v515, %v513
        %v517 = vxor.u32 %v516, 2147483648
        %v518 = vsel %vm435, %v517, %v516
        %v519 = vsub.s32 4, %v495
        %v520 = vsel %vm435, %v519, %v495
        %v521 = vsel %vm434, %v417, %v518
        %v522 = vsel %vm434, 0, %v520
        %v523 = vcosq.f32.pop %v521
        %v524 = vsinq.f32.pop %v521
        %vm525 = vweird.f32 %v417
        %v526 = vand.u32 %v522, 3
        %vm527 = vcmp.lt.s32.totalorder %v526, 2
        %vm528 = vcmp.eq.s32.totalorder %v526, 0
        %v529 = vxor.u32 %v524, 2147483648
        %v530 = vsel %vm528, %v523, %v529
        %vm531 = vcmp.eq.s32.totalorder %v526, 2
        %v532 = vxor.u32 %v523, 2147483648
        %v533 = vsel %vm531, %v532, %v524
        %v534 = vsel %vm527, %v530, %v533
        %v535 = vsel %vm525, nan, %v534
        %v536 = vand.u32 2147483647, %v418
        %vm537 = vcmp.le.f32.partialorder %v536, 0.7853982
        %vm538 = vcmp.lt.s32.totalorder %v418, 0
        %v539 = vand.u32 %v418, 2139095040
        %v540 = vshrl.u32 %v539, 23
        %v541 = vsub.s32 %v540, 127
        %v542 = vand.u32 2147483647, %v418
        %v543 = vand.u32 %v542, 8388607
        %v544 = vor.u32 %v543, 8388608
        %v545 = vsub.s32 0, %v544
        %v546 = vadd.s32 %v541, 1
        %vm547 = vcmp.gt.s32.totalorder %v546, 0
        %v548 = vsel %vm547, %v546, 0
        %v549 = vshrl.u32 %v548, 5
        %v550 = vand.u32 %v548, 31
        %v551 = vsub.s32 32, %v550
        %v552 = vshrl.u32 683565275, %v551
        %v553 = vshll.u32 683565275, %v550
        %v554 = vshrl.u32 2475754826, %v551
        %v555 = vor.u32 %v553, %v554
        %v556 = vshll.u32 2475754826, %v550
        %v557 = vshrl.u32 2131351028, %v551
        %v558 = vor.u32 %v556, %v557
        %v559 = vshll.u32 2131351028, %v550
        %v560 = vshrl.u32 2102212464, %v551
        %v561 = vor.u32 %v559, %v560
        %v562 = vshll.u32 2102212464, %v550
        %v563 = vshrl.u32 920167782, %v551
        %v564 = vor.u32 %v562, %v563
        %v565 = vshll.u32 920167782, %v550
        %v566 = vshrl.u32 1326507024, %v551
        %v567 = vor.u32 %v565, %v566
        %vm568 = vcmp.lt.s32.totalorder %v549, 1
        %vm569 = vcmp.lt.s32.totalorder %v549, 2
        %vm570 = vcmp.lt.s32.totalorder %v549, 3
        %vm571 = vcmp.lt.s32.totalorder %v549, 4
        %v572 = vsel %vm568, %v552, %v555
        %v573 = vsel %vm571, %v561, 2102212464
        %v574 = vsel %vm570, %v558, %v573
        %v575 = vsel %vm569, %v572, %v574
        %v576 = vsel %vm568, %v555, %v558
        %v577 = vsel %vm571, %v564, 920167782
        %v578 = vsel %vm570, %v561, %v577
        %v579 = vsel %vm569, %v576, %v578
        %v580 = vsel %vm568, %v558, %v561
        %v581 = vsel %vm571, %v567, 1326507024
        %v582 = vsel %vm570, %v564, %v581
        %v583 = vsel %vm569, %v580, %v582
        %v584 = vshll.u32 %v544, 8
        %v585 = vmul.u32.u64.compose %v584, %v583
        %v586 = vextract.low.u32 %v585
        %v587 = vextract.high.u32 %v585
        %v588 = vmul.u32.u64.compose %v584, %v579
        %v589 = vextract.low.u32 %v588
        %v590 = vextract.high.u32 %v588
        %v591 = vmul.u32 %v584, %v575
        %v592 = vadd.s32 %v587, %v589
        %vm593 = vc.u32 %v587, %v589
        %v594 = vadd.s32 %v590, 1
        %v595 = vsel %vm593, %v594, %v590
        %v596 = vadd.s32 %v591, %v595
        %v597 = vadd.s32 %v596, 536870912
        %v598 = vshrl.u32 %v597, 30
        %v599 = vshll.u32 %v598, 30
        %v600 = vsub.s32 %v596, %v599
        %vm601 = vcmp.lt.s32.totalorder %v600, 0
        %v602 = vsub.s32 0, %v600
        %v603 = vsel %vm601, %v602, %v600
        %v604 = vclz %v603
        %v605 = vsub.s32 %v604, 2
        %vm606 = vcmp.gt.s32.totalorder 0, %v605
        %v607 = vsel %vm606, 0, %v605
        %v608 = vsub.s32 32, %v607
        %v609 = vshll.u32 %v600, %v607
        %v610 = vshrl.u32 %v592, %v608
        %v611 = vor.u32 %v609, %v610
        %v612 = vsub.s32 4294967266, %v607
        %v613 = vadd.s32 %v612, 127
        %v614 = vshll.u32 %v613, 23
        %v615 = vor.u32 4788187, %v614
        %v616 = vand.u32 2147483647, %v615
        %v618 = vcvt.s32.f32 %v611
        %v619 = vmul.f32 %v618, %v616
        %v620 = vxor.u32 %v619, 2147483648
        %v621 = vsel %vm538, %v620, %v619
        %v622 = vsub.s32 4, %v598
        %v623 = vsel %vm538, %v622, %v598
        %v624 = vsel %vm537, %v418, %v621
        %v625 = vsel %vm537, 0, %v623
        %v626 = vcosq.f32.pop %v624
        %v627 = vsinq.f32.pop %v624
        %vm628 = vweird.f32 %v418
        %v629 = vand.u32 %v625, 3
        %vm630 = vcmp.lt.s32.totalorder %v629, 2
        %vm631 = vcmp.eq.s32.totalorder %v629, 0
        %v632 = vxor.u32 %v627, 2147483648
        %v633 = vsel %vm631, %v626, %v632
        %vm634 = vcmp.eq.s32.totalorder %v629, 2
        %v635 = vxor.u32 %v626, 2147483648
        %v636 = vsel %vm634, %v635, %v627
        %v637 = vsel %vm630, %v633, %v636
        %v638 = vsel %vm628, nan, %v637
        %v639 = vand.u32 2147483647, %v419
        %vm640 = vcmp.le.f32.partialorder %v639, 0.7853982
        %vm641 = vcmp.lt.s32.totalorder %v419, 0
        %v642 = vand.u32 %v419, 2139095040
        %v643 = vshrl.u32 %v642, 23
        %v644 = vsub.s32 %v643, 127
        %v645 = vand.u32 2147483647, %v419
        %v646 = vand.u32 %v645, 8388607
        %v647 = vor.u32 %v646, 8388608
        %v648 = vsub.s32 0, %v647
        %v649 = vadd.s32 %v644, 1
        %vm650 = vcmp.gt.s32.totalorder %v649, 0
        %v651 = vsel %vm650, %v649, 0
        %v652 = vshrl.u32 %v651, 5
        %v653 = vand.u32 %v651, 31
        %v654 = vsub.s32 32, %v653
        %v655 = vshrl.u32 683565275, %v654
        %v656 = vshll.u32 683565275, %v653
        %v657 = vshrl.u32 2475754826, %v654
        %v658 = vor.u32 %v656, %v657
        %v659 = vshll.u32 2475754826, %v653
        %v660 = vshrl.u32 2131351028, %v654
        %v661 = vor.u32 %v659, %v660
        %v662 = vshll.u32 2131351028, %v653
        %v663 = vshrl.u32 2102212464, %v654
        %v664 = vor.u32 %v662, %v663
        %v665 = vshll.u32 2102212464, %v653
        %v666 = vshrl.u32 920167782, %v654
        %v667 = vor.u32 %v665, %v666
        %v668 = vshll.u32 920167782, %v653
        %v669 = vshrl.u32 1326507024, %v654
        %v670 = vor.u32 %v668, %v669
        %vm671 = vcmp.lt.s32.totalorder %v652, 1
        %vm672 = vcmp.lt.s32.totalorder %v652, 2
        %vm673 = vcmp.lt.s32.totalorder %v652, 3
        %vm674 = vcmp.lt.s32.totalorder %v652, 4
        %v675 = vsel %vm671, %v655, %v658
        %v676 = vsel %vm674, %v664, 2102212464
        %v677 = vsel %vm673, %v661, %v676
        %v678 = vsel %vm672, %v675, %v677
        %v679 = vsel %vm671, %v658, %v661
        %v680 = vsel %vm674, %v667, 920167782
        %v681 = vsel %vm673, %v664, %v680
        %v682 = vsel %vm672, %v679, %v681
        %v683 = vsel %vm671, %v661, %v664
        %v684 = vsel %vm674, %v670, 1326507024
        %v685 = vsel %vm673, %v667, %v684
        %v686 = vsel %vm672, %v683, %v685
        %v687 = vshll.u32 %v647, 8
        %v688 = vmul.u32.u64.compose %v687, %v686
        %v689 = vextract.low.u32 %v688
        %v690 = vextract.high.u32 %v688
        %v691 = vmul.u32.u64.compose %v687, %v682
        %v692 = vextract.low.u32 %v691
        %v693 = vextract.high.u32 %v691
        %v694 = vmul.u32 %v687, %v678
        %v695 = vadd.s32 %v690, %v692
        %vm696 = vc.u32 %v690, %v692
        %v697 = vadd.s32 %v693, 1
        %v698 = vsel %vm696, %v697, %v693
        %v699 = vadd.s32 %v694, %v698
        %v700 = vadd.s32 %v699, 536870912
        %v701 = vshrl.u32 %v700, 30
        %v702 = vshll.u32 %v701, 30
        %v703 = vsub.s32 %v699, %v702
        %vm704 = vcmp.lt.s32.totalorder %v703, 0
        %v705 = vsub.s32 0, %v703
        %v706 = vsel %vm704, %v705, %v703
        %v707 = vclz %v706
        %v708 = vsub.s32 %v707, 2
        %vm709 = vcmp.gt.s32.totalorder 0, %v708
        %v710 = vsel %vm709, 0, %v708
        %v711 = vsub.s32 32, %v710
        %v712 = vshll.u32 %v703, %v710
        %v713 = vshrl.u32 %v695, %v711
        %v714 = vor.u32 %v712, %v713
        %v715 = vsub.s32 4294967266, %v710
        %v716 = vadd.s32 %v715, 127
        %v717 = vshll.u32 %v716, 23
        %v718 = vor.u32 4788187, %v717
        %v719 = vand.u32 2147483647, %v718
        %v721 = vcvt.s32.f32 %v714
        %v722 = vmul.f32 %v721, %v719
        %v723 = vxor.u32 %v722, 2147483648
        %v724 = vsel %vm641, %v723, %v722
        %v725 = vsub.s32 4, %v701
        %v726 = vsel %vm641, %v725, %v701
        %v727 = vsel %vm640, %v419, %v724
        %v728 = vsel %vm640, 0, %v726
        %v729 = vcosq.f32.pop %v727
        %v730 = vsinq.f32.pop %v727
        %vm731 = vweird.f32 %v419
        %v732 = vand.u32 %v728, 3
        %vm733 = vcmp.lt.s32.totalorder %v732, 2
        %vm734 = vcmp.eq.s32.totalorder %v732, 0
        %v735 = vxor.u32 %v730, 2147483648
        %v736 = vsel %vm734, %v729, %v735
        %vm737 = vcmp.eq.s32.totalorder %v732, 2
        %v738 = vxor.u32 %v729, 2147483648
        %v739 = vsel %vm737, %v738, %v730
        %v740 = vsel %vm733, %v736, %v739
        %v741 = vsel %vm731, nan, %v740
        %v742 = vand.u32 2147483647, %v420
        %vm743 = vcmp.le.f32.partialorder %v742, 0.7853982
        %vm744 = vcmp.lt.s32.totalorder %v420, 0
        %v745 = vand.u32 %v420, 2139095040
        %v746 = vshrl.u32 %v745, 23
        %v747 = vsub.s32 %v746, 127
        %v748 = vand.u32 2147483647, %v420
        %v749 = vand.u32 %v748, 8388607
        %v750 = vor.u32 %v749, 8388608
        %v751 = vsub.s32 0, %v750
        %v752 = vadd.s32 %v747, 1
        %vm753 = vcmp.gt.s32.totalorder %v752, 0
        %v754 = vsel %vm753, %v752, 0
        %v755 = vshrl.u32 %v754, 5
        %v756 = vand.u32 %v754, 31
        %v757 = vsub.s32 32, %v756
        %v758 = vshrl.u32 683565275, %v757
        %v759 = vshll.u32 683565275, %v756
        %v760 = vshrl.u32 2475754826, %v757
        %v761 = vor.u32 %v759, %v760
        %v762 = vshll.u32 2475754826, %v756
        %v763 = vshrl.u32 2131351028, %v757
        %v764 = vor.u32 %v762, %v763
        %v765 = vshll.u32 2131351028, %v756
        %v766 = vshrl.u32 2102212464, %v757
        %v767 = vor.u32 %v765, %v766
        %v768 = vshll.u32 2102212464, %v756
        %v769 = vshrl.u32 920167782, %v757
        %v770 = vor.u32 %v768, %v769
        %v771 = vshll.u32 920167782, %v756
        %v772 = vshrl.u32 1326507024, %v757
        %v773 = vor.u32 %v771, %v772
        %vm774 = vcmp.lt.s32.totalorder %v755, 1
        %vm775 = vcmp.lt.s32.totalorder %v755, 2
        %vm776 = vcmp.lt.s32.totalorder %v755, 3
        %vm777 = vcmp.lt.s32.totalorder %v755, 4
        %v778 = vsel %vm774, %v758, %v761
        %v779 = vsel %vm777, %v767, 2102212464
        %v780 = vsel %vm776, %v764, %v779
        %v781 = vsel %vm775, %v778, %v780
        %v782 = vsel %vm774, %v761, %v764
        %v783 = vsel %vm777, %v770, 920167782
        %v784 = vsel %vm776, %v767, %v783
        %v785 = vsel %vm775, %v782, %v784
        %v786 = vsel %vm774, %v764, %v767
        %v787 = vsel %vm777, %v773, 1326507024
        %v788 = vsel %vm776, %v770, %v787
        %v789 = vsel %vm775, %v786, %v788
        %v790 = vshll.u32 %v750, 8
        %v791 = vmul.u32.u64.compose %v790, %v789
        %v792 = vextract.low.u32 %v791
        %v793 = vextract.high.u32 %v791
        %v794 = vmul.u32.u64.compose %v790, %v785
        %v795 = vextract.low.u32 %v794
        %v796 = vextract.high.u32 %v794
        %v797 = vmul.u32 %v790, %v781
        %v798 = vadd.s32 %v793, %v795
        %vm799 = vc.u32 %v793, %v795
        %v800 = vadd.s32 %v796, 1
        %v801 = vsel %vm799, %v800, %v796
        %v802 = vadd.s32 %v797, %v801
        %v803 = vadd.s32 %v802, 536870912
        %v804 = vshrl.u32 %v803, 30
        %v805 = vshll.u32 %v804, 30
        %v806 = vsub.s32 %v802, %v805
        %vm807 = vcmp.lt.s32.totalorder %v806, 0
        %v808 = vsub.s32 0, %v806
        %v809 = vsel %vm807, %v808, %v806
        %v810 = vclz %v809
        %v811 = vsub.s32 %v810, 2
        %vm812 = vcmp.gt.s32.totalorder 0, %v811
        %v813 = vsel %vm812, 0, %v811
        %v814 = vsub.s32 32, %v813
        %v815 = vshll.u32 %v806, %v813
        %v816 = vshrl.u32 %v798, %v814
        %v817 = vor.u32 %v815, %v816
        %v818 = vsub.s32 4294967266, %v813
        %v819 = vadd.s32 %v818, 127
        %v820 = vshll.u32 %v819, 23
        %v821 = vor.u32 4788187, %v820
        %v822 = vand.u32 2147483647, %v821
        %v824 = vcvt.s32.f32 %v817
        %v825 = vmul.f32 %v824, %v822
        %v826 = vxor.u32 %v825, 2147483648
        %v827 = vsel %vm744, %v826, %v825
        %v828 = vsub.s32 4, %v804
        %v829 = vsel %vm744, %v828, %v804
        %v830 = vsel %vm743, %v420, %v827
        %v831 = vsel %vm743, 0, %v829
        %v832 = vcosq.f32.pop %v830
        %v833 = vsinq.f32.pop %v830
        %vm834 = vweird.f32 %v420
        %v835 = vand.u32 %v831, 3
        %vm836 = vcmp.lt.s32.totalorder %v835, 2
        %vm837 = vcmp.eq.s32.totalorder %v835, 0
        %v838 = vxor.u32 %v833, 2147483648
        %v839 = vsel %vm837, %v832, %v838
        %vm840 = vcmp.eq.s32.totalorder %v835, 2
        %v841 = vxor.u32 %v832, 2147483648
        %v842 = vsel %vm840, %v841, %v833
        %v843 = vsel %vm836, %v839, %v842
        %v844 = vsel %vm834, nan, %v843
        %v845 = vand.u32 2147483647, %v421
        %vm846 = vcmp.le.f32.partialorder %v845, 0.7853982
        %vm847 = vcmp.lt.s32.totalorder %v421, 0
        %v848 = vand.u32 %v421, 2139095040
        %v849 = vshrl.u32 %v848, 23
        %v850 = vsub.s32 %v849, 127
        %v851 = vand.u32 2147483647, %v421
        %v852 = vand.u32 %v851, 8388607
        %v853 = vor.u32 %v852, 8388608
        %v854 = vsub.s32 0, %v853
        %v855 = vadd.s32 %v850, 1
        %vm856 = vcmp.gt.s32.totalorder %v855, 0
        %v857 = vsel %vm856, %v855, 0
        %v858 = vshrl.u32 %v857, 5
        %v859 = vand.u32 %v857, 31
        %v860 = vsub.s32 32, %v859
        %v861 = vshrl.u32 683565275, %v860
        %v862 = vshll.u32 683565275, %v859
        %v863 = vshrl.u32 2475754826, %v860
        %v864 = vor.u32 %v862, %v863
        %v865 = vshll.u32 2475754826, %v859
        %v866 = vshrl.u32 2131351028, %v860
        %v867 = vor.u32 %v865, %v866
        %v868 = vshll.u32 2131351028, %v859
        %v869 = vshrl.u32 2102212464, %v860
        %v870 = vor.u32 %v868, %v869
        %v871 = vshll.u32 2102212464, %v859
        %v872 = vshrl.u32 920167782, %v860
        %v873 = vor.u32 %v871, %v872
        %v874 = vshll.u32 920167782, %v859
        %v875 = vshrl.u32 1326507024, %v860
        %v876 = vor.u32 %v874, %v875
        %vm877 = vcmp.lt.s32.totalorder %v858, 1
        %vm878 = vcmp.lt.s32.totalorder %v858, 2
        %vm879 = vcmp.lt.s32.totalorder %v858, 3
        %vm880 = vcmp.lt.s32.totalorder %v858, 4
        %v881 = vsel %vm877, %v861, %v864
        %v882 = vsel %vm880, %v870, 2102212464
        %v883 = vsel %vm879, %v867, %v882
        %v884 = vsel %vm878, %v881, %v883
        %v885 = vsel %vm877, %v864, %v867
        %v886 = vsel %vm880, %v873, 920167782
        %v887 = vsel %vm879, %v870, %v886
        %v888 = vsel %vm878, %v885, %v887
        %v889 = vsel %vm877, %v867, %v870
        %v890 = vsel %vm880, %v876, 1326507024
        %v891 = vsel %vm879, %v873, %v890
        %v892 = vsel %vm878, %v889, %v891
        %v893 = vshll.u32 %v853, 8
        %v894 = vmul.u32.u64.compose %v893, %v892
        %v895 = vextract.low.u32 %v894
        %v896 = vextract.high.u32 %v894
        %v897 = vmul.u32.u64.compose %v893, %v888
        %v898 = vextract.low.u32 %v897
        %v899 = vextract.high.u32 %v897
        %v900 = vmul.u32 %v893, %v884
        %v901 = vadd.s32 %v896, %v898
        %vm902 = vc.u32 %v896, %v898
        %v903 = vadd.s32 %v899, 1
        %v904 = vsel %vm902, %v903, %v899
        %v905 = vadd.s32 %v900, %v904
        %v906 = vadd.s32 %v905, 536870912
        %v907 = vshrl.u32 %v906, 30
        %v908 = vshll.u32 %v907, 30
        %v909 = vsub.s32 %v905, %v908
        %vm910 = vcmp.lt.s32.totalorder %v909, 0
        %v911 = vsub.s32 0, %v909
        %v912 = vsel %vm910, %v911, %v909
        %v913 = vclz %v912
        %v914 = vsub.s32 %v913, 2
        %vm915 = vcmp.gt.s32.totalorder 0, %v914
        %v916 = vsel %vm915, 0, %v914
        %v917 = vsub.s32 32, %v916
        %v918 = vshll.u32 %v909, %v916
        %v919 = vshrl.u32 %v901, %v917
        %v920 = vor.u32 %v918, %v919
        %v921 = vsub.s32 4294967266, %v916
        %v922 = vadd.s32 %v921, 127
        %v923 = vshll.u32 %v922, 23
        %v924 = vor.u32 4788187, %v923
        %v925 = vand.u32 2147483647, %v924
        %v927 = vcvt.s32.f32 %v920
        %v928 = vmul.f32 %v927, %v925
        %v929 = vxor.u32 %v928, 2147483648
        %v930 = vsel %vm847, %v929, %v928
        %v931 = vsub.s32 4, %v907
        %v932 = vsel %vm847, %v931, %v907
        %v933 = vsel %vm846, %v421, %v930
        %v934 = vsel %vm846, 0, %v932
        %v935 = vcosq.f32.pop %v933
        %v936 = vsinq.f32.pop %v933
        %vm937 = vweird.f32 %v421
        %v938 = vand.u32 %v934, 3
        %vm939 = vcmp.lt.s32.totalorder %v938, 2
        %vm940 = vcmp.eq.s32.totalorder %v938, 0
        %v941 = vxor.u32 %v936, 2147483648
        %v942 = vsel %vm940, %v935, %v941
        %vm943 = vcmp.eq.s32.totalorder %v938, 2
        %v944 = vxor.u32 %v935, 2147483648
        %v945 = vsel %vm943, %v944, %v936
        %v946 = vsel %vm939, %v942, %v945
        %v947 = vsel %vm937, nan, %v946
        %v948 = vand.u32 2147483647, %v422
        %vm949 = vcmp.le.f32.partialorder %v948, 0.7853982
        %vm950 = vcmp.lt.s32.totalorder %v422, 0
        %v951 = vand.u32 %v422, 2139095040
        %v952 = vshrl.u32 %v951, 23
        %v953 = vsub.s32 %v952, 127
        %v954 = vand.u32 2147483647, %v422
        %v955 = vand.u32 %v954, 8388607
        %v956 = vor.u32 %v955, 8388608
        %v957 = vsub.s32 0, %v956
        %v958 = vadd.s32 %v953, 1
        %vm959 = vcmp.gt.s32.totalorder %v958, 0
        %v960 = vsel %vm959, %v958, 0
        %v961 = vshrl.u32 %v960, 5
        %v962 = vand.u32 %v960, 31
        %v963 = vsub.s32 32, %v962
        %v964 = vshrl.u32 683565275, %v963
        %v965 = vshll.u32 683565275, %v962
        %v966 = vshrl.u32 2475754826, %v963
        %v967 = vor.u32 %v965, %v966
        %v968 = vshll.u32 2475754826, %v962
        %v969 = vshrl.u32 2131351028, %v963
        %v970 = vor.u32 %v968, %v969
        %v971 = vshll.u32 2131351028, %v962
        %v972 = vshrl.u32 2102212464, %v963
        %v973 = vor.u32 %v971, %v972
        %v974 = vshll.u32 2102212464, %v962
        %v975 = vshrl.u32 920167782, %v963
        %v976 = vor.u32 %v974, %v975
        %v977 = vshll.u32 920167782, %v962
        %v978 = vshrl.u32 1326507024, %v963
        %v979 = vor.u32 %v977, %v978
        %vm980 = vcmp.lt.s32.totalorder %v961, 1
        %vm981 = vcmp.lt.s32.totalorder %v961, 2
        %vm982 = vcmp.lt.s32.totalorder %v961, 3
        %vm983 = vcmp.lt.s32.totalorder %v961, 4
        %v984 = vsel %vm980, %v964, %v967
        %v985 = vsel %vm983, %v973, 2102212464
        %v986 = vsel %vm982, %v970, %v985
        %v987 = vsel %vm981, %v984, %v986
        %v988 = vsel %vm980, %v967, %v970
        %v989 = vsel %vm983, %v976, 920167782
        %v990 = vsel %vm982, %v973, %v989
        %v991 = vsel %vm981, %v988, %v990
        %v992 = vsel %vm980, %v970, %v973
        %v993 = vsel %vm983, %v979, 1326507024
        %v994 = vsel %vm982, %v976, %v993
        %v995 = vsel %vm981, %v992, %v994
        %v996 = vshll.u32 %v956, 8
        %v997 = vmul.u32.u64.compose %v996, %v995
        %v998 = vextract.low.u32 %v997
        %v999 = vextract.high.u32 %v997
        %v1000 = vmul.u32.u64.compose %v996, %v991
        %v1001 = vextract.low.u32 %v1000
        %v1002 = vextract.high.u32 %v1000
        %v1003 = vmul.u32 %v996, %v987
        %v1004 = vadd.s32 %v999, %v1001
        %vm1005 = vc.u32 %v999, %v1001
        %v1006 = vadd.s32 %v1002, 1
        %v1007 = vsel %vm1005, %v1006, %v1002
        %v1008 = vadd.s32 %v1003, %v1007
        %v1009 = vadd.s32 %v1008, 536870912
        %v1010 = vshrl.u32 %v1009, 30
        %v1011 = vshll.u32 %v1010, 30
        %v1012 = vsub.s32 %v1008, %v1011
        %vm1013 = vcmp.lt.s32.totalorder %v1012, 0
        %v1014 = vsub.s32 0, %v1012
        %v1015 = vsel %vm1013, %v1014, %v1012
        %v1016 = vclz %v1015
        %v1017 = vsub.s32 %v1016, 2
        %vm1018 = vcmp.gt.s32.totalorder 0, %v1017
        %v1019 = vsel %vm1018, 0, %v1017
        %v1020 = vsub.s32 32, %v1019
        %v1021 = vshll.u32 %v1012, %v1019
        %v1022 = vshrl.u32 %v1004, %v1020
        %v1023 = vor.u32 %v1021, %v1022
        %v1024 = vsub.s32 4294967266, %v1019
        %v1025 = vadd.s32 %v1024, 127
        %v1026 = vshll.u32 %v1025, 23
        %v1027 = vor.u32 4788187, %v1026
        %v1028 = vand.u32 2147483647, %v1027
        %v1030 = vcvt.s32.f32 %v1023
        %v1031 = vmul.f32 %v1030, %v1028
        %v1032 = vxor.u32 %v1031, 2147483648
        %v1033 = vsel %vm950, %v1032, %v1031
        %v1034 = vsub.s32 4, %v1010
        %v1035 = vsel %vm950, %v1034, %v1010
        %v1036 = vsel %vm949, %v422, %v1033
        %v1037 = vsel %vm949, 0, %v1035
        %v1038 = vcosq.f32.pop %v1036
        %v1039 = vsinq.f32.pop %v1036
        %vm1040 = vweird.f32 %v422
        %v1041 = vand.u32 %v1037, 3
        %vm1042 = vcmp.lt.s32.totalorder %v1041, 2
        %vm1043 = vcmp.eq.s32.totalorder %v1041, 0
        %v1044 = vxor.u32 %v1039, 2147483648
        %v1045 = vsel %vm1043, %v1038, %v1044
        %vm1046 = vcmp.eq.s32.totalorder %v1041, 2
        %v1047 = vxor.u32 %v1038, 2147483648
        %v1048 = vsel %vm1046, %v1047, %v1039
        %v1049 = vsel %vm1042, %v1045, %v1048
        %v1050 = vsel %vm1040, nan, %v1049
        %v1051 = vand.u32 2147483647, %v423
        %vm1052 = vcmp.le.f32.partialorder %v1051, 0.7853982
        %vm1053 = vcmp.lt.s32.totalorder %v423, 0
        %v1054 = vand.u32 %v423, 2139095040
        %v1055 = vshrl.u32 %v1054, 23
        %v1056 = vsub.s32 %v1055, 127
        %v1057 = vand.u32 2147483647, %v423
        %v1058 = vand.u32 %v1057, 8388607
        %v1059 = vor.u32 %v1058, 8388608
        %v1060 = vsub.s32 0, %v1059
        %v1061 = vadd.s32 %v1056, 1
        %vm1062 = vcmp.gt.s32.totalorder %v1061, 0
        %v1063 = vsel %vm1062, %v1061, 0
        %v1064 = vshrl.u32 %v1063, 5
        %v1065 = vand.u32 %v1063, 31
        %v1066 = vsub.s32 32, %v1065
        %v1067 = vshrl.u32 683565275, %v1066
        %v1068 = vshll.u32 683565275, %v1065
        %v1069 = vshrl.u32 2475754826, %v1066
        %v1070 = vor.u32 %v1068, %v1069
        %v1071 = vshll.u32 2475754826, %v1065
        %v1072 = vshrl.u32 2131351028, %v1066
        %v1073 = vor.u32 %v1071, %v1072
        %v1074 = vshll.u32 2131351028, %v1065
        %v1075 = vshrl.u32 2102212464, %v1066
        %v1076 = vor.u32 %v1074, %v1075
        %v1077 = vshll.u32 2102212464, %v1065
        %v1078 = vshrl.u32 920167782, %v1066
        %v1079 = vor.u32 %v1077, %v1078
        %v1080 = vshll.u32 920167782, %v1065
        %v1081 = vshrl.u32 1326507024, %v1066
        %v1082 = vor.u32 %v1080, %v1081
        %vm1083 = vcmp.lt.s32.totalorder %v1064, 1
        %vm1084 = vcmp.lt.s32.totalorder %v1064, 2
        %vm1085 = vcmp.lt.s32.totalorder %v1064, 3
        %vm1086 = vcmp.lt.s32.totalorder %v1064, 4
        %v1087 = vsel %vm1083, %v1067, %v1070
        %v1088 = vsel %vm1086, %v1076, 2102212464
        %v1089 = vsel %vm1085, %v1073, %v1088
        %v1090 = vsel %vm1084, %v1087, %v1089
        %v1091 = vsel %vm1083, %v1070, %v1073
        %v1092 = vsel %vm1086, %v1079, 920167782
        %v1093 = vsel %vm1085, %v1076, %v1092
        %v1094 = vsel %vm1084, %v1091, %v1093
        %v1095 = vsel %vm1083, %v1073, %v1076
        %v1096 = vsel %vm1086, %v1082, 1326507024
        %v1097 = vsel %vm1085, %v1079, %v1096
        %v1098 = vsel %vm1084, %v1095, %v1097
        %v1099 = vshll.u32 %v1059, 8
        %v1100 = vmul.u32.u64.compose %v1099, %v1098
        %v1101 = vextract.low.u32 %v1100
        %v1102 = vextract.high.u32 %v1100
        %v1103 = vmul.u32.u64.compose %v1099, %v1094
        %v1104 = vextract.low.u32 %v1103
        %v1105 = vextract.high.u32 %v1103
        %v1106 = vmul.u32 %v1099, %v1090
        %v1107 = vadd.s32 %v1102, %v1104
        %vm1108 = vc.u32 %v1102, %v1104
        %v1109 = vadd.s32 %v1105, 1
        %v1110 = vsel %vm1108, %v1109, %v1105
        %v1111 = vadd.s32 %v1106, %v1110
        %v1112 = vadd.s32 %v1111, 536870912
        %v1113 = vshrl.u32 %v1112, 30
        %v1114 = vshll.u32 %v1113, 30
        %v1115 = vsub.s32 %v1111, %v1114
        %vm1116 = vcmp.lt.s32.totalorder %v1115, 0
        %v1117 = vsub.s32 0, %v1115
        %v1118 = vsel %vm1116, %v1117, %v1115
        %v1119 = vclz %v1118
        %v1120 = vsub.s32 %v1119, 2
        %vm1121 = vcmp.gt.s32.totalorder 0, %v1120
        %v1122 = vsel %vm1121, 0, %v1120
        %v1123 = vsub.s32 32, %v1122
        %v1124 = vshll.u32 %v1115, %v1122
        %v1125 = vshrl.u32 %v1107, %v1123
        %v1126 = vor.u32 %v1124, %v1125
        %v1127 = vsub.s32 4294967266, %v1122
        %v1128 = vadd.s32 %v1127, 127
        %v1129 = vshll.u32 %v1128, 23
        %v1130 = vor.u32 4788187, %v1129
        %v1131 = vand.u32 2147483647, %v1130
        %v1133 = vcvt.s32.f32 %v1126
        %v1134 = vmul.f32 %v1133, %v1131
        %v1135 = vxor.u32 %v1134, 2147483648
        %v1136 = vsel %vm1053, %v1135, %v1134
        %v1137 = vsub.s32 4, %v1113
        %v1138 = vsel %vm1053, %v1137, %v1113
        %v1139 = vsel %vm1052, %v423, %v1136
        %v1140 = vsel %vm1052, 0, %v1138
        %v1141 = vcosq.f32.pop %v1139
        %v1142 = vsinq.f32.pop %v1139
        %vm1143 = vweird.f32 %v423
        %v1144 = vand.u32 %v1140, 3
        %vm1145 = vcmp.lt.s32.totalorder %v1144, 2
        %vm1146 = vcmp.eq.s32.totalorder %v1144, 0
        %v1147 = vxor.u32 %v1142, 2147483648
        %v1148 = vsel %vm1146, %v1141, %v1147
        %vm1149 = vcmp.eq.s32.totalorder %v1144, 2
        %v1150 = vxor.u32 %v1141, 2147483648
        %v1151 = vsel %vm1149, %v1150, %v1142
        %v1152 = vsel %vm1145, %v1148, %v1151
        %v1153 = vsel %vm1143, nan, %v1152
        %v1154 = vand.u32 2147483647, %v424
        %vm1155 = vcmp.le.f32.partialorder %v1154, 0.7853982
        %vm1156 = vcmp.lt.s32.totalorder %v424, 0
        %v1157 = vand.u32 %v424, 2139095040
        %v1158 = vshrl.u32 %v1157, 23
        %v1159 = vsub.s32 %v1158, 127
        %v1160 = vand.u32 2147483647, %v424
        %v1161 = vand.u32 %v1160, 8388607
        %v1162 = vor.u32 %v1161, 8388608
        %v1163 = vsub.s32 0, %v1162
        %v1164 = vadd.s32 %v1159, 1
        %vm1165 = vcmp.gt.s32.totalorder %v1164, 0
        %v1166 = vsel %vm1165, %v1164, 0
        %v1167 = vshrl.u32 %v1166, 5
        %v1168 = vand.u32 %v1166, 31
        %v1169 = vsub.s32 32, %v1168
        %v1170 = vshrl.u32 683565275, %v1169
        %v1171 = vshll.u32 683565275, %v1168
        %v1172 = vshrl.u32 2475754826, %v1169
        %v1173 = vor.u32 %v1171, %v1172
        %v1174 = vshll.u32 2475754826, %v1168
        %v1175 = vshrl.u32 2131351028, %v1169
        %v1176 = vor.u32 %v1174, %v1175
        %v1177 = vshll.u32 2131351028, %v1168
        %v1178 = vshrl.u32 2102212464, %v1169
        %v1179 = vor.u32 %v1177, %v1178
        %v1180 = vshll.u32 2102212464, %v1168
        %v1181 = vshrl.u32 920167782, %v1169
        %v1182 = vor.u32 %v1180, %v1181
        %v1183 = vshll.u32 920167782, %v1168
        %v1184 = vshrl.u32 1326507024, %v1169
        %v1185 = vor.u32 %v1183, %v1184
        %vm1186 = vcmp.lt.s32.totalorder %v1167, 1
        %vm1187 = vcmp.lt.s32.totalorder %v1167, 2
        %vm1188 = vcmp.lt.s32.totalorder %v1167, 3
        %vm1189 = vcmp.lt.s32.totalorder %v1167, 4
        %v1190 = vsel %vm1186, %v1170, %v1173
        %v1191 = vsel %vm1189, %v1179, 2102212464
        %v1192 = vsel %vm1188, %v1176, %v1191
        %v1193 = vsel %vm1187, %v1190, %v1192
        %v1194 = vsel %vm1186, %v1173, %v1176
        %v1195 = vsel %vm1189, %v1182, 920167782
        %v1196 = vsel %vm1188, %v1179, %v1195
        %v1197 = vsel %vm1187, %v1194, %v1196
        %v1198 = vsel %vm1186, %v1176, %v1179
        %v1199 = vsel %vm1189, %v1185, 1326507024
        %v1200 = vsel %vm1188, %v1182, %v1199
        %v1201 = vsel %vm1187, %v1198, %v1200
        %v1202 = vshll.u32 %v1162, 8
        %v1203 = vmul.u32.u64.compose %v1202, %v1201
        %v1204 = vextract.low.u32 %v1203
        %v1205 = vextract.high.u32 %v1203
        %v1206 = vmul.u32.u64.compose %v1202, %v1197
        %v1207 = vextract.low.u32 %v1206
        %v1208 = vextract.high.u32 %v1206
        %v1209 = vmul.u32 %v1202, %v1193
        %v1210 = vadd.s32 %v1205, %v1207
        %vm1211 = vc.u32 %v1205, %v1207
        %v1212 = vadd.s32 %v1208, 1
        %v1213 = vsel %vm1211, %v1212, %v1208
        %v1214 = vadd.s32 %v1209, %v1213
        %v1215 = vadd.s32 %v1214, 536870912
        %v1216 = vshrl.u32 %v1215, 30
        %v1217 = vshll.u32 %v1216, 30
        %v1218 = vsub.s32 %v1214, %v1217
        %vm1219 = vcmp.lt.s32.totalorder %v1218, 0
        %v1220 = vsub.s32 0, %v1218
        %v1221 = vsel %vm1219, %v1220, %v1218
        %v1222 = vclz %v1221
        %v1223 = vsub.s32 %v1222, 2
        %vm1224 = vcmp.gt.s32.totalorder 0, %v1223
        %v1225 = vsel %vm1224, 0, %v1223
        %v1226 = vsub.s32 32, %v1225
        %v1227 = vshll.u32 %v1218, %v1225
        %v1228 = vshrl.u32 %v1210, %v1226
        %v1229 = vor.u32 %v1227, %v1228
        %v1230 = vsub.s32 4294967266, %v1225
        %v1231 = vadd.s32 %v1230, 127
        %v1232 = vshll.u32 %v1231, 23
        %v1233 = vor.u32 4788187, %v1232
        %v1234 = vand.u32 2147483647, %v1233
        %v1236 = vcvt.s32.f32 %v1229
        %v1237 = vmul.f32 %v1236, %v1234
        %v1238 = vxor.u32 %v1237, 2147483648
        %v1239 = vsel %vm1156, %v1238, %v1237
        %v1240 = vsub.s32 4, %v1216
        %v1241 = vsel %vm1156, %v1240, %v1216
        %v1242 = vsel %vm1155, %v424, %v1239
        %v1243 = vsel %vm1155, 0, %v1241
        %v1244 = vcosq.f32.pop %v1242
        %v1245 = vsinq.f32.pop %v1242
        %vm1246 = vweird.f32 %v424
        %v1247 = vand.u32 %v1243, 3
        %vm1248 = vcmp.lt.s32.totalorder %v1247, 2
        %vm1249 = vcmp.eq.s32.totalorder %v1247, 0
        %v1250 = vxor.u32 %v1245, 2147483648
        %v1251 = vsel %vm1249, %v1244, %v1250
        %vm1252 = vcmp.eq.s32.totalorder %v1247, 2
        %v1253 = vxor.u32 %v1244, 2147483648
        %v1254 = vsel %vm1252, %v1253, %v1245
        %v1255 = vsel %vm1248, %v1251, %v1254
        %v1256 = vsel %vm1246, nan, %v1255
        %v1257 = vand.u32 2147483647, %v425
        %vm1258 = vcmp.le.f32.partialorder %v1257, 0.7853982
        %vm1259 = vcmp.lt.s32.totalorder %v425, 0
        %v1260 = vand.u32 %v425, 2139095040
        %v1261 = vshrl.u32 %v1260, 23
        %v1262 = vsub.s32 %v1261, 127
        %v1263 = vand.u32 2147483647, %v425
        %v1264 = vand.u32 %v1263, 8388607
        %v1265 = vor.u32 %v1264, 8388608
        %v1266 = vsub.s32 0, %v1265
        %v1267 = vadd.s32 %v1262, 1
        %vm1268 = vcmp.gt.s32.totalorder %v1267, 0
        %v1269 = vsel %vm1268, %v1267, 0
        %v1270 = vshrl.u32 %v1269, 5
        %v1271 = vand.u32 %v1269, 31
        %v1272 = vsub.s32 32, %v1271
        %v1273 = vshrl.u32 683565275, %v1272
        %v1274 = vshll.u32 683565275, %v1271
        %v1275 = vshrl.u32 2475754826, %v1272
        %v1276 = vor.u32 %v1274, %v1275
        %v1277 = vshll.u32 2475754826, %v1271
        %v1278 = vshrl.u32 2131351028, %v1272
        %v1279 = vor.u32 %v1277, %v1278
        %v1280 = vshll.u32 2131351028, %v1271
        %v1281 = vshrl.u32 2102212464, %v1272
        %v1282 = vor.u32 %v1280, %v1281
        %v1283 = vshll.u32 2102212464, %v1271
        %v1284 = vshrl.u32 920167782, %v1272
        %v1285 = vor.u32 %v1283, %v1284
        %v1286 = vshll.u32 920167782, %v1271
        %v1287 = vshrl.u32 1326507024, %v1272
        %v1288 = vor.u32 %v1286, %v1287
        %vm1289 = vcmp.lt.s32.totalorder %v1270, 1
        %vm1290 = vcmp.lt.s32.totalorder %v1270, 2
        %vm1291 = vcmp.lt.s32.totalorder %v1270, 3
        %vm1292 = vcmp.lt.s32.totalorder %v1270, 4
        %v1293 = vsel %vm1289, %v1273, %v1276
        %v1294 = vsel %vm1292, %v1282, 2102212464
        %v1295 = vsel %vm1291, %v1279, %v1294
        %v1296 = vsel %vm1290, %v1293, %v1295
        %v1297 = vsel %vm1289, %v1276, %v1279
        %v1298 = vsel %vm1292, %v1285, 920167782
        %v1299 = vsel %vm1291, %v1282, %v1298
        %v1300 = vsel %vm1290, %v1297, %v1299
        %v1301 = vsel %vm1289, %v1279, %v1282
        %v1302 = vsel %vm1292, %v1288, 1326507024
        %v1303 = vsel %vm1291, %v1285, %v1302
        %v1304 = vsel %vm1290, %v1301, %v1303
        %v1305 = vshll.u32 %v1265, 8
        %v1306 = vmul.u32.u64.compose %v1305, %v1304
        %v1307 = vextract.low.u32 %v1306
        %v1308 = vextract.high.u32 %v1306
        %v1309 = vmul.u32.u64.compose %v1305, %v1300
        %v1310 = vextract.low.u32 %v1309
        %v1311 = vextract.high.u32 %v1309
        %v1312 = vmul.u32 %v1305, %v1296
        %v1313 = vadd.s32 %v1308, %v1310
        %vm1314 = vc.u32 %v1308, %v1310
        %v1315 = vadd.s32 %v1311, 1
        %v1316 = vsel %vm1314, %v1315, %v1311
        %v1317 = vadd.s32 %v1312, %v1316
        %v1318 = vadd.s32 %v1317, 536870912
        %v1319 = vshrl.u32 %v1318, 30
        %v1320 = vshll.u32 %v1319, 30
        %v1321 = vsub.s32 %v1317, %v1320
        %vm1322 = vcmp.lt.s32.totalorder %v1321, 0
        %v1323 = vsub.s32 0, %v1321
        %v1324 = vsel %vm1322, %v1323, %v1321
        %v1325 = vclz %v1324
        %v1326 = vsub.s32 %v1325, 2
        %vm1327 = vcmp.gt.s32.totalorder 0, %v1326
        %v1328 = vsel %vm1327, 0, %v1326
        %v1329 = vsub.s32 32, %v1328
        %v1330 = vshll.u32 %v1321, %v1328
        %v1331 = vshrl.u32 %v1313, %v1329
        %v1332 = vor.u32 %v1330, %v1331
        %v1333 = vsub.s32 4294967266, %v1328
        %v1334 = vadd.s32 %v1333, 127
        %v1335 = vshll.u32 %v1334, 23
        %v1336 = vor.u32 4788187, %v1335
        %v1337 = vand.u32 2147483647, %v1336
        %v1339 = vcvt.s32.f32 %v1332
        %v1340 = vmul.f32 %v1339, %v1337
        %v1341 = vxor.u32 %v1340, 2147483648
        %v1342 = vsel %vm1259, %v1341, %v1340
        %v1343 = vsub.s32 4, %v1319
        %v1344 = vsel %vm1259, %v1343, %v1319
        %v1345 = vsel %vm1258, %v425, %v1342
        %v1346 = vsel %vm1258, 0, %v1344
        %v1347 = vcosq.f32.pop %v1345
        %v1348 = vsinq.f32.pop %v1345
        %vm1349 = vweird.f32 %v425
        %v1350 = vand.u32 %v1346, 3
        %vm1351 = vcmp.lt.s32.totalorder %v1350, 2
        %vm1352 = vcmp.eq.s32.totalorder %v1350, 0
        %v1353 = vxor.u32 %v1348, 2147483648
        %v1354 = vsel %vm1352, %v1347, %v1353
        %vm1355 = vcmp.eq.s32.totalorder %v1350, 2
        %v1356 = vxor.u32 %v1347, 2147483648
        %v1357 = vsel %vm1355, %v1356, %v1348
        %v1358 = vsel %vm1351, %v1354, %v1357
        %v1359 = vsel %vm1349, nan, %v1358
        %v1360 = vand.u32 2147483647, %v426
        %vm1361 = vcmp.le.f32.partialorder %v1360, 0.7853982
        %vm1362 = vcmp.lt.s32.totalorder %v426, 0
        %v1363 = vand.u32 %v426, 2139095040
        %v1364 = vshrl.u32 %v1363, 23
        %v1365 = vsub.s32 %v1364, 127
        %v1366 = vand.u32 2147483647, %v426
        %v1367 = vand.u32 %v1366, 8388607
        %v1368 = vor.u32 %v1367, 8388608
        %v1369 = vsub.s32 0, %v1368
        %v1370 = vadd.s32 %v1365, 1
        %vm1371 = vcmp.gt.s32.totalorder %v1370, 0
        %v1372 = vsel %vm1371, %v1370, 0
        %v1373 = vshrl.u32 %v1372, 5
        %v1374 = vand.u32 %v1372, 31
        %v1375 = vsub.s32 32, %v1374
        %v1376 = vshrl.u32 683565275, %v1375
        %v1377 = vshll.u32 683565275, %v1374
        %v1378 = vshrl.u32 2475754826, %v1375
        %v1379 = vor.u32 %v1377, %v1378
        %v1380 = vshll.u32 2475754826, %v1374
        %v1381 = vshrl.u32 2131351028, %v1375
        %v1382 = vor.u32 %v1380, %v1381
        %v1383 = vshll.u32 2131351028, %v1374
        %v1384 = vshrl.u32 2102212464, %v1375
        %v1385 = vor.u32 %v1383, %v1384
        %v1386 = vshll.u32 2102212464, %v1374
        %v1387 = vshrl.u32 920167782, %v1375
        %v1388 = vor.u32 %v1386, %v1387
        %v1389 = vshll.u32 920167782, %v1374
        %v1390 = vshrl.u32 1326507024, %v1375
        %v1391 = vor.u32 %v1389, %v1390
        %vm1392 = vcmp.lt.s32.totalorder %v1373, 1
        %vm1393 = vcmp.lt.s32.totalorder %v1373, 2
        %vm1394 = vcmp.lt.s32.totalorder %v1373, 3
        %vm1395 = vcmp.lt.s32.totalorder %v1373, 4
        %v1396 = vsel %vm1392, %v1376, %v1379
        %v1397 = vsel %vm1395, %v1385, 2102212464
        %v1398 = vsel %vm1394, %v1382, %v1397
        %v1399 = vsel %vm1393, %v1396, %v1398
        %v1400 = vsel %vm1392, %v1379, %v1382
        %v1401 = vsel %vm1395, %v1388, 920167782
        %v1402 = vsel %vm1394, %v1385, %v1401
        %v1403 = vsel %vm1393, %v1400, %v1402
        %v1404 = vsel %vm1392, %v1382, %v1385
        %v1405 = vsel %vm1395, %v1391, 1326507024
        %v1406 = vsel %vm1394, %v1388, %v1405
        %v1407 = vsel %vm1393, %v1404, %v1406
        %v1408 = vshll.u32 %v1368, 8
        %v1409 = vmul.u32.u64.compose %v1408, %v1407
        %v1410 = vextract.low.u32 %v1409
        %v1411 = vextract.high.u32 %v1409
        %v1412 = vmul.u32.u64.compose %v1408, %v1403
        %v1413 = vextract.low.u32 %v1412
        %v1414 = vextract.high.u32 %v1412
        %v1415 = vmul.u32 %v1408, %v1399
        %v1416 = vadd.s32 %v1411, %v1413
        %vm1417 = vc.u32 %v1411, %v1413
        %v1418 = vadd.s32 %v1414, 1
        %v1419 = vsel %vm1417, %v1418, %v1414
        %v1420 = vadd.s32 %v1415, %v1419
        %v1421 = vadd.s32 %v1420, 536870912
        %v1422 = vshrl.u32 %v1421, 30
        %v1423 = vshll.u32 %v1422, 30
        %v1424 = vsub.s32 %v1420, %v1423
        %vm1425 = vcmp.lt.s32.totalorder %v1424, 0
        %v1426 = vsub.s32 0, %v1424
        %v1427 = vsel %vm1425, %v1426, %v1424
        %v1428 = vclz %v1427
        %v1429 = vsub.s32 %v1428, 2
        %vm1430 = vcmp.gt.s32.totalorder 0, %v1429
        %v1431 = vsel %vm1430, 0, %v1429
        %v1432 = vsub.s32 32, %v1431
        %v1433 = vshll.u32 %v1424, %v1431
        %v1434 = vshrl.u32 %v1416, %v1432
        %v1435 = vor.u32 %v1433, %v1434
        %v1436 = vsub.s32 4294967266, %v1431
        %v1437 = vadd.s32 %v1436, 127
        %v1438 = vshll.u32 %v1437, 23
        %v1439 = vor.u32 4788187, %v1438
        %v1440 = vand.u32 2147483647, %v1439
        %v1442 = vcvt.s32.f32 %v1435
        %v1443 = vmul.f32 %v1442, %v1440
        %v1444 = vxor.u32 %v1443, 2147483648
        %v1445 = vsel %vm1362, %v1444, %v1443
        %v1446 = vsub.s32 4, %v1422
        %v1447 = vsel %vm1362, %v1446, %v1422
        %v1448 = vsel %vm1361, %v426, %v1445
        %v1449 = vsel %vm1361, 0, %v1447
        %v1450 = vcosq.f32.pop %v1448
        %v1451 = vsinq.f32.pop %v1448
        %vm1452 = vweird.f32 %v426
        %v1453 = vand.u32 %v1449, 3
        %vm1454 = vcmp.lt.s32.totalorder %v1453, 2
        %vm1455 = vcmp.eq.s32.totalorder %v1453, 0
        %v1456 = vxor.u32 %v1451, 2147483648
        %v1457 = vsel %vm1455, %v1450, %v1456
        %vm1458 = vcmp.eq.s32.totalorder %v1453, 2
        %v1459 = vxor.u32 %v1450, 2147483648
        %v1460 = vsel %vm1458, %v1459, %v1451
        %v1461 = vsel %vm1454, %v1457, %v1460
        %v1462 = vsel %vm1452, nan, %v1461
        %v1463 = vand.u32 2147483647, %v427
        %vm1464 = vcmp.le.f32.partialorder %v1463, 0.7853982
        %vm1465 = vcmp.lt.s32.totalorder %v427, 0
        %v1466 = vand.u32 %v427, 2139095040
        %v1467 = vshrl.u32 %v1466, 23
        %v1468 = vsub.s32 %v1467, 127
        %v1469 = vand.u32 2147483647, %v427
        %v1470 = vand.u32 %v1469, 8388607
        %v1471 = vor.u32 %v1470, 8388608
        %v1472 = vsub.s32 0, %v1471
        %v1473 = vadd.s32 %v1468, 1
        %vm1474 = vcmp.gt.s32.totalorder %v1473, 0
        %v1475 = vsel %vm1474, %v1473, 0
        %v1476 = vshrl.u32 %v1475, 5
        %v1477 = vand.u32 %v1475, 31
        %v1478 = vsub.s32 32, %v1477
        %v1479 = vshrl.u32 683565275, %v1478
        %v1480 = vshll.u32 683565275, %v1477
        %v1481 = vshrl.u32 2475754826, %v1478
        %v1482 = vor.u32 %v1480, %v1481
        %v1483 = vshll.u32 2475754826, %v1477
        %v1484 = vshrl.u32 2131351028, %v1478
        %v1485 = vor.u32 %v1483, %v1484
        %v1486 = vshll.u32 2131351028, %v1477
        %v1487 = vshrl.u32 2102212464, %v1478
        %v1488 = vor.u32 %v1486, %v1487
        %v1489 = vshll.u32 2102212464, %v1477
        %v1490 = vshrl.u32 920167782, %v1478
        %v1491 = vor.u32 %v1489, %v1490
        %v1492 = vshll.u32 920167782, %v1477
        %v1493 = vshrl.u32 1326507024, %v1478
        %v1494 = vor.u32 %v1492, %v1493
        %vm1495 = vcmp.lt.s32.totalorder %v1476, 1
        %vm1496 = vcmp.lt.s32.totalorder %v1476, 2
        %vm1497 = vcmp.lt.s32.totalorder %v1476, 3
        %vm1498 = vcmp.lt.s32.totalorder %v1476, 4
        %v1499 = vsel %vm1495, %v1479, %v1482
        %v1500 = vsel %vm1498, %v1488, 2102212464
        %v1501 = vsel %vm1497, %v1485, %v1500
        %v1502 = vsel %vm1496, %v1499, %v1501
        %v1503 = vsel %vm1495, %v1482, %v1485
        %v1504 = vsel %vm1498, %v1491, 920167782
        %v1505 = vsel %vm1497, %v1488, %v1504
        %v1506 = vsel %vm1496, %v1503, %v1505
        %v1507 = vsel %vm1495, %v1485, %v1488
        %v1508 = vsel %vm1498, %v1494, 1326507024
        %v1509 = vsel %vm1497, %v1491, %v1508
        %v1510 = vsel %vm1496, %v1507, %v1509
        %v1511 = vshll.u32 %v1471, 8
        %v1512 = vmul.u32.u64.compose %v1511, %v1510
        %v1513 = vextract.low.u32 %v1512
        %v1514 = vextract.high.u32 %v1512
        %v1515 = vmul.u32.u64.compose %v1511, %v1506
        %v1516 = vextract.low.u32 %v1515
        %v1517 = vextract.high.u32 %v1515
        %v1518 = vmul.u32 %v1511, %v1502
        %v1519 = vadd.s32 %v1514, %v1516
        %vm1520 = vc.u32 %v1514, %v1516
        %v1521 = vadd.s32 %v1517, 1
        %v1522 = vsel %vm1520, %v1521, %v1517
        %v1523 = vadd.s32 %v1518, %v1522
        %v1524 = vadd.s32 %v1523, 536870912
        %v1525 = vshrl.u32 %v1524, 30
        %v1526 = vshll.u32 %v1525, 30
        %v1527 = vsub.s32 %v1523, %v1526
        %vm1528 = vcmp.lt.s32.totalorder %v1527, 0
        %v1529 = vsub.s32 0, %v1527
        %v1530 = vsel %vm1528, %v1529, %v1527
        %v1531 = vclz %v1530
        %v1532 = vsub.s32 %v1531, 2
        %vm1533 = vcmp.gt.s32.totalorder 0, %v1532
        %v1534 = vsel %vm1533, 0, %v1532
        %v1535 = vsub.s32 32, %v1534
        %v1536 = vshll.u32 %v1527, %v1534
        %v1537 = vshrl.u32 %v1519, %v1535
        %v1538 = vor.u32 %v1536, %v1537
        %v1539 = vsub.s32 4294967266, %v1534
        %v1540 = vadd.s32 %v1539, 127
        %v1541 = vshll.u32 %v1540, 23
        %v1542 = vor.u32 4788187, %v1541
        %v1543 = vand.u32 2147483647, %v1542
        %v1545 = vcvt.s32.f32 %v1538
        %v1546 = vmul.f32 %v1545, %v1543
        %v1547 = vxor.u32 %v1546, 2147483648
        %v1548 = vsel %vm1465, %v1547, %v1546
        %v1549 = vsub.s32 4, %v1525
        %v1550 = vsel %vm1465, %v1549, %v1525
        %v1551 = vsel %vm1464, %v427, %v1548
        %v1552 = vsel %vm1464, 0, %v1550
        %v1553 = vcosq.f32.pop %v1551
        %v1554 = vsinq.f32.pop %v1551
        %vm1555 = vweird.f32 %v427
        %v1556 = vand.u32 %v1552, 3
        %vm1557 = vcmp.lt.s32.totalorder %v1556, 2
        %vm1558 = vcmp.eq.s32.totalorder %v1556, 0
        %v1559 = vxor.u32 %v1554, 2147483648
        %v1560 = vsel %vm1558, %v1553, %v1559
        %vm1561 = vcmp.eq.s32.totalorder %v1556, 2
        %v1562 = vxor.u32 %v1553, 2147483648
        %v1563 = vsel %vm1561, %v1562, %v1554
        %v1564 = vsel %vm1557, %v1560, %v1563
        %v1565 = vsel %vm1555, nan, %v1564
        %v1566 = vand.u32 2147483647, %v428
        %vm1567 = vcmp.le.f32.partialorder %v1566, 0.7853982
        %vm1568 = vcmp.lt.s32.totalorder %v428, 0
        %v1569 = vand.u32 %v428, 2139095040
        %v1570 = vshrl.u32 %v1569, 23
        %v1571 = vsub.s32 %v1570, 127
        %v1572 = vand.u32 2147483647, %v428
        %v1573 = vand.u32 %v1572, 8388607
        %v1574 = vor.u32 %v1573, 8388608
        %v1575 = vsub.s32 0, %v1574
        %v1576 = vadd.s32 %v1571, 1
        %vm1577 = vcmp.gt.s32.totalorder %v1576, 0
        %v1578 = vsel %vm1577, %v1576, 0
        %v1579 = vshrl.u32 %v1578, 5
        %v1580 = vand.u32 %v1578, 31
        %v1581 = vsub.s32 32, %v1580
        %v1582 = vshrl.u32 683565275, %v1581
        %v1583 = vshll.u32 683565275, %v1580
        %v1584 = vshrl.u32 2475754826, %v1581
        %v1585 = vor.u32 %v1583, %v1584
        %v1586 = vshll.u32 2475754826, %v1580
        %v1587 = vshrl.u32 2131351028, %v1581
        %v1588 = vor.u32 %v1586, %v1587
        %v1589 = vshll.u32 2131351028, %v1580
        %v1590 = vshrl.u32 2102212464, %v1581
        %v1591 = vor.u32 %v1589, %v1590
        %v1592 = vshll.u32 2102212464, %v1580
        %v1593 = vshrl.u32 920167782, %v1581
        %v1594 = vor.u32 %v1592, %v1593
        %v1595 = vshll.u32 920167782, %v1580
        %v1596 = vshrl.u32 1326507024, %v1581
        %v1597 = vor.u32 %v1595, %v1596
        %vm1598 = vcmp.lt.s32.totalorder %v1579, 1
        %vm1599 = vcmp.lt.s32.totalorder %v1579, 2
        %vm1600 = vcmp.lt.s32.totalorder %v1579, 3
        %vm1601 = vcmp.lt.s32.totalorder %v1579, 4
        %v1602 = vsel %vm1598, %v1582, %v1585
        %v1603 = vsel %vm1601, %v1591, 2102212464
        %v1604 = vsel %vm1600, %v1588, %v1603
        %v1605 = vsel %vm1599, %v1602, %v1604
        %v1606 = vsel %vm1598, %v1585, %v1588
        %v1607 = vsel %vm1601, %v1594, 920167782
        %v1608 = vsel %vm1600, %v1591, %v1607
        %v1609 = vsel %vm1599, %v1606, %v1608
        %v1610 = vsel %vm1598, %v1588, %v1591
        %v1611 = vsel %vm1601, %v1597, 1326507024
        %v1612 = vsel %vm1600, %v1594, %v1611
        %v1613 = vsel %vm1599, %v1610, %v1612
        %v1614 = vshll.u32 %v1574, 8
        %v1615 = vmul.u32.u64.compose %v1614, %v1613
        %v1616 = vextract.low.u32 %v1615
        %v1617 = vextract.high.u32 %v1615
        %v1618 = vmul.u32.u64.compose %v1614, %v1609
        %v1619 = vextract.low.u32 %v1618
        %v1620 = vextract.high.u32 %v1618
        %v1621 = vmul.u32 %v1614, %v1605
        %v1622 = vadd.s32 %v1617, %v1619
        %vm1623 = vc.u32 %v1617, %v1619
        %v1624 = vadd.s32 %v1620, 1
        %v1625 = vsel %vm1623, %v1624, %v1620
        %v1626 = vadd.s32 %v1621, %v1625
        %v1627 = vadd.s32 %v1626, 536870912
        %v1628 = vshrl.u32 %v1627, 30
        %v1629 = vshll.u32 %v1628, 30
        %v1630 = vsub.s32 %v1626, %v1629
        %vm1631 = vcmp.lt.s32.totalorder %v1630, 0
        %v1632 = vsub.s32 0, %v1630
        %v1633 = vsel %vm1631, %v1632, %v1630
        %v1634 = vclz %v1633
        %v1635 = vsub.s32 %v1634, 2
        %vm1636 = vcmp.gt.s32.totalorder 0, %v1635
        %v1637 = vsel %vm1636, 0, %v1635
        %v1638 = vsub.s32 32, %v1637
        %v1639 = vshll.u32 %v1630, %v1637
        %v1640 = vshrl.u32 %v1622, %v1638
        %v1641 = vor.u32 %v1639, %v1640
        %v1642 = vsub.s32 4294967266, %v1637
        %v1643 = vadd.s32 %v1642, 127
        %v1644 = vshll.u32 %v1643, 23
        %v1645 = vor.u32 4788187, %v1644
        %v1646 = vand.u32 2147483647, %v1645
        %v1648 = vcvt.s32.f32 %v1641
        %v1649 = vmul.f32 %v1648, %v1646
        %v1650 = vxor.u32 %v1649, 2147483648
        %v1651 = vsel %vm1568, %v1650, %v1649
        %v1652 = vsub.s32 4, %v1628
        %v1653 = vsel %vm1568, %v1652, %v1628
        %v1654 = vsel %vm1567, %v428, %v1651
        %v1655 = vsel %vm1567, 0, %v1653
        %v1656 = vcosq.f32.pop %v1654
        %v1657 = vsinq.f32.pop %v1654
        %vm1658 = vweird.f32 %v428
        %v1659 = vand.u32 %v1655, 3
        %vm1660 = vcmp.lt.s32.totalorder %v1659, 2
        %vm1661 = vcmp.eq.s32.totalorder %v1659, 0
        %v1662 = vxor.u32 %v1657, 2147483648
        %v1663 = vsel %vm1661, %v1656, %v1662
        %vm1664 = vcmp.eq.s32.totalorder %v1659, 2
        %v1665 = vxor.u32 %v1656, 2147483648
        %v1666 = vsel %vm1664, %v1665, %v1657
        %v1667 = vsel %vm1660, %v1663, %v1666
        %v1668 = vsel %vm1658, nan, %v1667
        %v1669 = vand.u32 2147483647, %v429
        %vm1670 = vcmp.le.f32.partialorder %v1669, 0.7853982
        %vm1671 = vcmp.lt.s32.totalorder %v429, 0
        %v1672 = vand.u32 %v429, 2139095040
        %v1673 = vshrl.u32 %v1672, 23
        %v1674 = vsub.s32 %v1673, 127
        %v1675 = vand.u32 2147483647, %v429
        %v1676 = vand.u32 %v1675, 8388607
        %v1677 = vor.u32 %v1676, 8388608
        %v1678 = vsub.s32 0, %v1677
        %v1679 = vadd.s32 %v1674, 1
        %vm1680 = vcmp.gt.s32.totalorder %v1679, 0
        %v1681 = vsel %vm1680, %v1679, 0
        %v1682 = vshrl.u32 %v1681, 5
        %v1683 = vand.u32 %v1681, 31
        %v1684 = vsub.s32 32, %v1683
        %v1685 = vshrl.u32 683565275, %v1684
        %v1686 = vshll.u32 683565275, %v1683
        %v1687 = vshrl.u32 2475754826, %v1684
        %v1688 = vor.u32 %v1686, %v1687
        %v1689 = vshll.u32 2475754826, %v1683
        %v1690 = vshrl.u32 2131351028, %v1684
        %v1691 = vor.u32 %v1689, %v1690
        %v1692 = vshll.u32 2131351028, %v1683
        %v1693 = vshrl.u32 2102212464, %v1684
        %v1694 = vor.u32 %v1692, %v1693
        %v1695 = vshll.u32 2102212464, %v1683
        %v1696 = vshrl.u32 920167782, %v1684
        %v1697 = vor.u32 %v1695, %v1696
        %v1698 = vshll.u32 920167782, %v1683
        %v1699 = vshrl.u32 1326507024, %v1684
        %v1700 = vor.u32 %v1698, %v1699
        %vm1701 = vcmp.lt.s32.totalorder %v1682, 1
        %vm1702 = vcmp.lt.s32.totalorder %v1682, 2
        %vm1703 = vcmp.lt.s32.totalorder %v1682, 3
        %vm1704 = vcmp.lt.s32.totalorder %v1682, 4
        %v1705 = vsel %vm1701, %v1685, %v1688
        %v1706 = vsel %vm1704, %v1694, 2102212464
        %v1707 = vsel %vm1703, %v1691, %v1706
        %v1708 = vsel %vm1702, %v1705, %v1707
        %v1709 = vsel %vm1701, %v1688, %v1691
        %v1710 = vsel %vm1704, %v1697, 920167782
        %v1711 = vsel %vm1703, %v1694, %v1710
        %v1712 = vsel %vm1702, %v1709, %v1711
        %v1713 = vsel %vm1701, %v1691, %v1694
        %v1714 = vsel %vm1704, %v1700, 1326507024
        %v1715 = vsel %vm1703, %v1697, %v1714
        %v1716 = vsel %vm1702, %v1713, %v1715
        %v1717 = vshll.u32 %v1677, 8
        %v1718 = vmul.u32.u64.compose %v1717, %v1716
        %v1719 = vextract.low.u32 %v1718
        %v1720 = vextract.high.u32 %v1718
        %v1721 = vmul.u32.u64.compose %v1717, %v1712
        %v1722 = vextract.low.u32 %v1721
        %v1723 = vextract.high.u32 %v1721
        %v1724 = vmul.u32 %v1717, %v1708
        %v1725 = vadd.s32 %v1720, %v1722
        %vm1726 = vc.u32 %v1720, %v1722
        %v1727 = vadd.s32 %v1723, 1
        %v1728 = vsel %vm1726, %v1727, %v1723
        %v1729 = vadd.s32 %v1724, %v1728
        %v1730 = vadd.s32 %v1729, 536870912
        %v1731 = vshrl.u32 %v1730, 30
        %v1732 = vshll.u32 %v1731, 30
        %v1733 = vsub.s32 %v1729, %v1732
        %vm1734 = vcmp.lt.s32.totalorder %v1733, 0
        %v1735 = vsub.s32 0, %v1733
        %v1736 = vsel %vm1734, %v1735, %v1733
        %v1737 = vclz %v1736
        %v1738 = vsub.s32 %v1737, 2
        %vm1739 = vcmp.gt.s32.totalorder 0, %v1738
        %v1740 = vsel %vm1739, 0, %v1738
        %v1741 = vsub.s32 32, %v1740
        %v1742 = vshll.u32 %v1733, %v1740
        %v1743 = vshrl.u32 %v1725, %v1741
        %v1744 = vor.u32 %v1742, %v1743
        %v1745 = vsub.s32 4294967266, %v1740
        %v1746 = vadd.s32 %v1745, 127
        %v1747 = vshll.u32 %v1746, 23
        %v1748 = vor.u32 4788187, %v1747
        %v1749 = vand.u32 2147483647, %v1748
        %v1751 = vcvt.s32.f32 %v1744
        %v1752 = vmul.f32 %v1751, %v1749
        %v1753 = vxor.u32 %v1752, 2147483648
        %v1754 = vsel %vm1671, %v1753, %v1752
        %v1755 = vsub.s32 4, %v1731
        %v1756 = vsel %vm1671, %v1755, %v1731
        %v1757 = vsel %vm1670, %v429, %v1754
        %v1758 = vsel %vm1670, 0, %v1756
        %v1759 = vcosq.f32.pop %v1757
        %v1760 = vsinq.f32.pop %v1757
        %vm1761 = vweird.f32 %v429
        %v1762 = vand.u32 %v1758, 3
        %vm1763 = vcmp.lt.s32.totalorder %v1762, 2
        %vm1764 = vcmp.eq.s32.totalorder %v1762, 0
        %v1765 = vxor.u32 %v1760, 2147483648
        %v1766 = vsel %vm1764, %v1759, %v1765
        %vm1767 = vcmp.eq.s32.totalorder %v1762, 2
        %v1768 = vxor.u32 %v1759, 2147483648
        %v1769 = vsel %vm1767, %v1768, %v1760
        %v1770 = vsel %vm1763, %v1766, %v1769
        %v1771 = vsel %vm1761, nan, %v1770
        %v1772 = vand.u32 2147483647, %v430
        %vm1773 = vcmp.le.f32.partialorder %v1772, 0.7853982
        %vm1774 = vcmp.lt.s32.totalorder %v430, 0
        %v1775 = vand.u32 %v430, 2139095040
        %v1776 = vshrl.u32 %v1775, 23
        %v1777 = vsub.s32 %v1776, 127
        %v1778 = vand.u32 2147483647, %v430
        %v1779 = vand.u32 %v1778, 8388607
        %v1780 = vor.u32 %v1779, 8388608
        %v1781 = vsub.s32 0, %v1780
        %v1782 = vadd.s32 %v1777, 1
        %vm1783 = vcmp.gt.s32.totalorder %v1782, 0
        %v1784 = vsel %vm1783, %v1782, 0
        %v1785 = vshrl.u32 %v1784, 5
        %v1786 = vand.u32 %v1784, 31
        %v1787 = vsub.s32 32, %v1786
        %v1788 = vshrl.u32 683565275, %v1787
        %v1789 = vshll.u32 683565275, %v1786
        %v1790 = vshrl.u32 2475754826, %v1787
        %v1791 = vor.u32 %v1789, %v1790
        %v1792 = vshll.u32 2475754826, %v1786
        %v1793 = vshrl.u32 2131351028, %v1787
        %v1794 = vor.u32 %v1792, %v1793
        %v1795 = vshll.u32 2131351028, %v1786
        %v1796 = vshrl.u32 2102212464, %v1787
        %v1797 = vor.u32 %v1795, %v1796
        %v1798 = vshll.u32 2102212464, %v1786
        %v1799 = vshrl.u32 920167782, %v1787
        %v1800 = vor.u32 %v1798, %v1799
        %v1801 = vshll.u32 920167782, %v1786
        %v1802 = vshrl.u32 1326507024, %v1787
        %v1803 = vor.u32 %v1801, %v1802
        %vm1804 = vcmp.lt.s32.totalorder %v1785, 1
        %vm1805 = vcmp.lt.s32.totalorder %v1785, 2
        %vm1806 = vcmp.lt.s32.totalorder %v1785, 3
        %vm1807 = vcmp.lt.s32.totalorder %v1785, 4
        %v1808 = vsel %vm1804, %v1788, %v1791
        %v1809 = vsel %vm1807, %v1797, 2102212464
        %v1810 = vsel %vm1806, %v1794, %v1809
        %v1811 = vsel %vm1805, %v1808, %v1810
        %v1812 = vsel %vm1804, %v1791, %v1794
        %v1813 = vsel %vm1807, %v1800, 920167782
        %v1814 = vsel %vm1806, %v1797, %v1813
        %v1815 = vsel %vm1805, %v1812, %v1814
        %v1816 = vsel %vm1804, %v1794, %v1797
        %v1817 = vsel %vm1807, %v1803, 1326507024
        %v1818 = vsel %vm1806, %v1800, %v1817
        %v1819 = vsel %vm1805, %v1816, %v1818
        %v1820 = vshll.u32 %v1780, 8
        %v1821 = vmul.u32.u64.compose %v1820, %v1819
        %v1822 = vextract.low.u32 %v1821
        %v1823 = vextract.high.u32 %v1821
        %v1824 = vmul.u32.u64.compose %v1820, %v1815
        %v1825 = vextract.low.u32 %v1824
        %v1826 = vextract.high.u32 %v1824
        %v1827 = vmul.u32 %v1820, %v1811
        %v1828 = vadd.s32 %v1823, %v1825
        %vm1829 = vc.u32 %v1823, %v1825
        %v1830 = vadd.s32 %v1826, 1
        %v1831 = vsel %vm1829, %v1830, %v1826
        %v1832 = vadd.s32 %v1827, %v1831
        %v1833 = vadd.s32 %v1832, 536870912
        %v1834 = vshrl.u32 %v1833, 30
        %v1835 = vshll.u32 %v1834, 30
        %v1836 = vsub.s32 %v1832, %v1835
        %vm1837 = vcmp.lt.s32.totalorder %v1836, 0
        %v1838 = vsub.s32 0, %v1836
        %v1839 = vsel %vm1837, %v1838, %v1836
        %v1840 = vclz %v1839
        %v1841 = vsub.s32 %v1840, 2
        %vm1842 = vcmp.gt.s32.totalorder 0, %v1841
        %v1843 = vsel %vm1842, 0, %v1841
        %v1844 = vsub.s32 32, %v1843
        %v1845 = vshll.u32 %v1836, %v1843
        %v1846 = vshrl.u32 %v1828, %v1844
        %v1847 = vor.u32 %v1845, %v1846
        %v1848 = vsub.s32 4294967266, %v1843
        %v1849 = vadd.s32 %v1848, 127
        %v1850 = vshll.u32 %v1849, 23
        %v1851 = vor.u32 4788187, %v1850
        %v1852 = vand.u32 2147483647, %v1851
        %v1854 = vcvt.s32.f32 %v1847
        %v1855 = vmul.f32 %v1854, %v1852
        %v1856 = vxor.u32 %v1855, 2147483648
        %v1857 = vsel %vm1774, %v1856, %v1855
        %v1858 = vsub.s32 4, %v1834
        %v1859 = vsel %vm1774, %v1858, %v1834
        %v1860 = vsel %vm1773, %v430, %v1857
        %v1861 = vsel %vm1773, 0, %v1859
        %v1862 = vcosq.f32.pop %v1860
        %v1863 = vsinq.f32.pop %v1860
        %vm1864 = vweird.f32 %v430
        %v1865 = vand.u32 %v1861, 3
        %vm1866 = vcmp.lt.s32.totalorder %v1865, 2
        %vm1867 = vcmp.eq.s32.totalorder %v1865, 0
        %v1868 = vxor.u32 %v1863, 2147483648
        %v1869 = vsel %vm1867, %v1862, %v1868
        %vm1870 = vcmp.eq.s32.totalorder %v1865, 2
        %v1871 = vxor.u32 %v1862, 2147483648
        %v1872 = vsel %vm1870, %v1871, %v1863
        %v1873 = vsel %vm1866, %v1869, %v1872
        %v1874 = vsel %vm1864, nan, %v1873
        %v1875 = vand.u32 2147483647, %v431
        %vm1876 = vcmp.le.f32.partialorder %v1875, 0.7853982
        %vm1877 = vcmp.lt.s32.totalorder %v431, 0
        %v1878 = vand.u32 %v431, 2139095040
        %v1879 = vshrl.u32 %v1878, 23
        %v1880 = vsub.s32 %v1879, 127
        %v1881 = vand.u32 2147483647, %v431
        %v1882 = vand.u32 %v1881, 8388607
        %v1883 = vor.u32 %v1882, 8388608
        %v1884 = vsub.s32 0, %v1883
        %v1885 = vadd.s32 %v1880, 1
        %vm1886 = vcmp.gt.s32.totalorder %v1885, 0
        %v1887 = vsel %vm1886, %v1885, 0
        %v1888 = vshrl.u32 %v1887, 5
        %v1889 = vand.u32 %v1887, 31
        %v1890 = vsub.s32 32, %v1889
        %v1891 = vshrl.u32 683565275, %v1890
        %v1892 = vshll.u32 683565275, %v1889
        %v1893 = vshrl.u32 2475754826, %v1890
        %v1894 = vor.u32 %v1892, %v1893
        %v1895 = vshll.u32 2475754826, %v1889
        %v1896 = vshrl.u32 2131351028, %v1890
        %v1897 = vor.u32 %v1895, %v1896
        %v1898 = vshll.u32 2131351028, %v1889
        %v1899 = vshrl.u32 2102212464, %v1890
        %v1900 = vor.u32 %v1898, %v1899
        %v1901 = vshll.u32 2102212464, %v1889
        %v1902 = vshrl.u32 920167782, %v1890
        %v1903 = vor.u32 %v1901, %v1902
        %v1904 = vshll.u32 920167782, %v1889
        %v1905 = vshrl.u32 1326507024, %v1890
        %v1906 = vor.u32 %v1904, %v1905
        %vm1907 = vcmp.lt.s32.totalorder %v1888, 1
        %vm1908 = vcmp.lt.s32.totalorder %v1888, 2
        %vm1909 = vcmp.lt.s32.totalorder %v1888, 3
        %vm1910 = vcmp.lt.s32.totalorder %v1888, 4
        %v1911 = vsel %vm1907, %v1891, %v1894
        %v1912 = vsel %vm1910, %v1900, 2102212464
        %v1913 = vsel %vm1909, %v1897, %v1912
        %v1914 = vsel %vm1908, %v1911, %v1913
        %v1915 = vsel %vm1907, %v1894, %v1897
        %v1916 = vsel %vm1910, %v1903, 920167782
        %v1917 = vsel %vm1909, %v1900, %v1916
        %v1918 = vsel %vm1908, %v1915, %v1917
        %v1919 = vsel %vm1907, %v1897, %v1900
        %v1920 = vsel %vm1910, %v1906, 1326507024
        %v1921 = vsel %vm1909, %v1903, %v1920
        %v1922 = vsel %vm1908, %v1919, %v1921
        %v1923 = vshll.u32 %v1883, 8
        %v1924 = vmul.u32.u64.compose %v1923, %v1922
        %v1925 = vextract.low.u32 %v1924
        %v1926 = vextract.high.u32 %v1924
        %v1927 = vmul.u32.u64.compose %v1923, %v1918
        %v1928 = vextract.low.u32 %v1927
        %v1929 = vextract.high.u32 %v1927
        %v1930 = vmul.u32 %v1923, %v1914
        %v1931 = vadd.s32 %v1926, %v1928
        %vm1932 = vc.u32 %v1926, %v1928
        %v1933 = vadd.s32 %v1929, 1
        %v1934 = vsel %vm1932, %v1933, %v1929
        %v1935 = vadd.s32 %v1930, %v1934
        %v1936 = vadd.s32 %v1935, 536870912
        %v1937 = vshrl.u32 %v1936, 30
        %v1938 = vshll.u32 %v1937, 30
        %v1939 = vsub.s32 %v1935, %v1938
        %vm1940 = vcmp.lt.s32.totalorder %v1939, 0
        %v1941 = vsub.s32 0, %v1939
        %v1942 = vsel %vm1940, %v1941, %v1939
        %v1943 = vclz %v1942
        %v1944 = vsub.s32 %v1943, 2
        %vm1945 = vcmp.gt.s32.totalorder 0, %v1944
        %v1946 = vsel %vm1945, 0, %v1944
        %v1947 = vsub.s32 32, %v1946
        %v1948 = vshll.u32 %v1939, %v1946
        %v1949 = vshrl.u32 %v1931, %v1947
        %v1950 = vor.u32 %v1948, %v1949
        %v1951 = vsub.s32 4294967266, %v1946
        %v1952 = vadd.s32 %v1951, 127
        %v1953 = vshll.u32 %v1952, 23
        %v1954 = vor.u32 4788187, %v1953
        %v1955 = vand.u32 2147483647, %v1954
        %v1957 = vcvt.s32.f32 %v1950
        %v1958 = vmul.f32 %v1957, %v1955
        %v1959 = vxor.u32 %v1958, 2147483648
        %v1960 = vsel %vm1877, %v1959, %v1958
        %v1961 = vsub.s32 4, %v1937
        %v1962 = vsel %vm1877, %v1961, %v1937
        %v1963 = vsel %vm1876, %v431, %v1960
        %v1964 = vsel %vm1876, 0, %v1962
        %v1965 = vcosq.f32.pop %v1963
        %v1966 = vsinq.f32.pop %v1963
        %vm1967 = vweird.f32 %v431
        %v1968 = vand.u32 %v1964, 3
        %vm1969 = vcmp.lt.s32.totalorder %v1968, 2
        %vm1970 = vcmp.eq.s32.totalorder %v1968, 0
        %v1971 = vxor.u32 %v1966, 2147483648
        %v1972 = vsel %vm1970, %v1965, %v1971
        %vm1973 = vcmp.eq.s32.totalorder %v1968, 2
        %v1974 = vxor.u32 %v1965, 2147483648
        %v1975 = vsel %vm1973, %v1974, %v1966
        %v1976 = vsel %vm1969, %v1972, %v1975
        %v1977 = vsel %vm1967, nan, %v1976
        %v1978 = vand.u32 2147483647, %v432
        %vm1979 = vcmp.le.f32.partialorder %v1978, 0.7853982
        %vm1980 = vcmp.lt.s32.totalorder %v432, 0
        %v1981 = vand.u32 %v432, 2139095040
        %v1982 = vshrl.u32 %v1981, 23
        %v1983 = vsub.s32 %v1982, 127
        %v1984 = vand.u32 2147483647, %v432
        %v1985 = vand.u32 %v1984, 8388607
        %v1986 = vor.u32 %v1985, 8388608
        %v1987 = vsub.s32 0, %v1986
        %v1988 = vadd.s32 %v1983, 1
        %vm1989 = vcmp.gt.s32.totalorder %v1988, 0
        %v1990 = vsel %vm1989, %v1988, 0
        %v1991 = vshrl.u32 %v1990, 5
        %v1992 = vand.u32 %v1990, 31
        %v1993 = vsub.s32 32, %v1992
        %v1994 = vshrl.u32 683565275, %v1993
        %v1995 = vshll.u32 683565275, %v1992
        %v1996 = vshrl.u32 2475754826, %v1993
        %v1997 = vor.u32 %v1995, %v1996
        %v1998 = vshll.u32 2475754826, %v1992
        %v1999 = vshrl.u32 2131351028, %v1993
        %v2000 = vor.u32 %v1998, %v1999
        %v2001 = vshll.u32 2131351028, %v1992
        %v2002 = vshrl.u32 2102212464, %v1993
        %v2003 = vor.u32 %v2001, %v2002
        %v2004 = vshll.u32 2102212464, %v1992
        %v2005 = vshrl.u32 920167782, %v1993
        %v2006 = vor.u32 %v2004, %v2005
        %v2007 = vshll.u32 920167782, %v1992
        %v2008 = vshrl.u32 1326507024, %v1993
        %v2009 = vor.u32 %v2007, %v2008
        %vm2010 = vcmp.lt.s32.totalorder %v1991, 1
        %vm2011 = vcmp.lt.s32.totalorder %v1991, 2
        %vm2012 = vcmp.lt.s32.totalorder %v1991, 3
        %vm2013 = vcmp.lt.s32.totalorder %v1991, 4
        %v2014 = vsel %vm2010, %v1994, %v1997
        %v2015 = vsel %vm2013, %v2003, 2102212464
        %v2016 = vsel %vm2012, %v2000, %v2015
        %v2017 = vsel %vm2011, %v2014, %v2016
        %v2018 = vsel %vm2010, %v1997, %v2000
        %v2019 = vsel %vm2013, %v2006, 920167782
        %v2020 = vsel %vm2012, %v2003, %v2019
        %v2021 = vsel %vm2011, %v2018, %v2020
        %v2022 = vsel %vm2010, %v2000, %v2003
        %v2023 = vsel %vm2013, %v2009, 1326507024
        %v2024 = vsel %vm2012, %v2006, %v2023
        %v2025 = vsel %vm2011, %v2022, %v2024
        %v2026 = vshll.u32 %v1986, 8
        %v2027 = vmul.u32.u64.compose %v2026, %v2025
        %v2028 = vextract.low.u32 %v2027
        %v2029 = vextract.high.u32 %v2027
        %v2030 = vmul.u32.u64.compose %v2026, %v2021
        %v2031 = vextract.low.u32 %v2030
        %v2032 = vextract.high.u32 %v2030
        %v2033 = vmul.u32 %v2026, %v2017
        %v2034 = vadd.s32 %v2029, %v2031
        %vm2035 = vc.u32 %v2029, %v2031
        %v2036 = vadd.s32 %v2032, 1
        %v2037 = vsel %vm2035, %v2036, %v2032
        %v2038 = vadd.s32 %v2033, %v2037
        %v2039 = vadd.s32 %v2038, 536870912
        %v2040 = vshrl.u32 %v2039, 30
        %v2041 = vshll.u32 %v2040, 30
        %v2042 = vsub.s32 %v2038, %v2041
        %vm2043 = vcmp.lt.s32.totalorder %v2042, 0
        %v2044 = vsub.s32 0, %v2042
        %v2045 = vsel %vm2043, %v2044, %v2042
        %v2046 = vclz %v2045
        %v2047 = vsub.s32 %v2046, 2
        %vm2048 = vcmp.gt.s32.totalorder 0, %v2047
        %v2049 = vsel %vm2048, 0, %v2047
        %v2050 = vsub.s32 32, %v2049
        %v2051 = vshll.u32 %v2042, %v2049
        %v2052 = vshrl.u32 %v2034, %v2050
        %v2053 = vor.u32 %v2051, %v2052
        %v2054 = vsub.s32 4294967266, %v2049
        %v2055 = vadd.s32 %v2054, 127
        %v2056 = vshll.u32 %v2055, 23
        %v2057 = vor.u32 4788187, %v2056
        %v2058 = vand.u32 2147483647, %v2057
        %v2060 = vcvt.s32.f32 %v2053
        %v2061 = vmul.f32 %v2060, %v2058
        %v2062 = vxor.u32 %v2061, 2147483648
        %v2063 = vsel %vm1980, %v2062, %v2061
        %v2064 = vsub.s32 4, %v2040
        %v2065 = vsel %vm1980, %v2064, %v2040
        %v2066 = vsel %vm1979, %v432, %v2063
        %v2067 = vsel %vm1979, 0, %v2065
        %v2068 = vcosq.f32.pop %v2066
        %v2069 = vsinq.f32.pop %v2066
        %vm2070 = vweird.f32 %v432
        %v2071 = vand.u32 %v2067, 3
        %vm2072 = vcmp.lt.s32.totalorder %v2071, 2
        %vm2073 = vcmp.eq.s32.totalorder %v2071, 0
        %v2074 = vxor.u32 %v2069, 2147483648
        %v2075 = vsel %vm2073, %v2068, %v2074
        %vm2076 = vcmp.eq.s32.totalorder %v2071, 2
        %v2077 = vxor.u32 %v2068, 2147483648
        %v2078 = vsel %vm2076, %v2077, %v2069
        %v2079 = vsel %vm2072, %v2075, %v2078
        %v2080 = vsel %vm2070, nan, %v2079
        %v2081 = vmul.f32 %v535, 1.1386294
        %v2082 = vmul.f32 %v638, 1.1386294
        %v2083 = vmul.f32 %v741, 1.1386294
        %v2084 = vmul.f32 %v844, 1.1386294
        %v2085 = vmul.f32 %v947, 1.1386294
        %v2086 = vmul.f32 %v1050, 1.1386294
        %v2087 = vmul.f32 %v1153, 1.1386294
        %v2088 = vmul.f32 %v1256, 1.1386294
        %v2089 = vmul.f32 %v1359, 1.1386294
        %v2090 = vmul.f32 %v1462, 1.1386294
        %v2091 = vmul.f32 %v1565, 1.1386294
        %v2092 = vmul.f32 %v1668, 1.1386294
        %v2093 = vmul.f32 %v1771, 1.1386294
        %v2094 = vmul.f32 %v1874, 1.1386294
        %v2095 = vmul.f32 %v1977, 1.1386294
        %v2096 = vmul.f32 %v2080, 1.1386294
        %vm2097 = vcmask 523264
        %2098 = vst.msk [vmem:[%s163] sm:$0xff] %vm2097, %v2081
        %2099 = vst.msk [vmem:[%s163 + $0x8] sm:$0xff] %vm2097, %v2082
        %2100 = vst.msk [vmem:[%s163 + $0x10] sm:$0xff] %vm2097, %v2083
        %2101 = vst.msk [vmem:[%s163 + $0x18] sm:$0xff] %vm2097, %v2084
        %2102 = vst.msk [vmem:[%s163 + $0x20] sm:$0xff] %vm2097, %v2085
        %2103 = vst.msk [vmem:[%s163 + $0x28] sm:$0xff] %vm2097, %v2086
        %2104 = vst.msk [vmem:[%s163 + $0x30] sm:$0xff] %vm2097, %v2087
        %2105 = vst.msk [vmem:[%s163 + $0x38] sm:$0xff] %vm2097, %v2088
        %2106 = vst.msk [vmem:[%s163 + $0x40] sm:$0xff] %vm2097, %v2089
        %2107 = vst.msk [vmem:[%s163 + $0x48] sm:$0xff] %vm2097, %v2090
        %2108 = vst.msk [vmem:[%s163 + $0x50] sm:$0xff] %vm2097, %v2091
        %2109 = vst.msk [vmem:[%s163 + $0x58] sm:$0xff] %vm2097, %v2092
        %2110 = vst.msk [vmem:[%s163 + $0x60] sm:$0xff] %vm2097, %v2093
        %2111 = vst.msk [vmem:[%s163 + $0x68] sm:$0xff] %vm2097, %v2094
        %2112 = vst.msk [vmem:[%s163 + $0x70] sm:$0xff] %vm2097, %v2095
        %2113 = vst.msk [vmem:[%s163 + $0x78] sm:$0xff] %vm2097, %v2096
        %s2114 = smul.u32 16, %s15
        %p2115 = scmp.lt.s32.totalorder %s2114, 31
        %s2116 = scalar_select %p2115, %s2114, 31
        %s2117 = smul.addr %s2116, 8
        %s2118 = scalar_lea.vmem %s3, %s2117
        // Predicated region
        $region37: #{tpu_custom_call.1} parent=31 // pred_check
          %p2119 = pneg %p96
        $region38: #{tpu_custom_call.1} parent=31 // pred_check_branch
          %2121 = sbr.rel (%p2119) target = $region40
        $region39: #{tpu_custom_call.1} parent=31 // pred_region
          %s2122 = smul.u32 16, %s15
        $region40: #{tpu_custom_call.1} parent=31 // pred_fallthru
          _
      $region32: #{tpu_custom_call.1} parent=5 // pred_fallthru
        _
      %p2123 = scmp.le.s32.totalorder 2, %s10
      // Predicated region
      $region41: #{tpu_custom_call.1} parent=5 // pred_check
        %p2124 = pneg %p2123
      $region42: #{tpu_custom_call.1} parent=5 // pred_check_branch
        %2126 = sbr.rel (%p2124) target = $region44
      $region43: #{tpu_custom_call.1} parent=5 // pred_region
        %s2127 = ssub.s32 %s10, 2
        // Predicated region
        $region45: #{tpu_custom_call.1} parent=43 // pred_check
          %p2128 = pneg %p102
        $region46: #{tpu_custom_call.1} parent=43 // pred_check_branch
          %2130 = sbr.rel (%p2128) target = $region48
        $region47: #{tpu_custom_call.1} parent=43 // pred_region
          %s2131 = smul.u32 16, %s16
          %p2132 = scmp.lt.s32.totalorder %s2131, 31
          %s2133 = scalar_select %p2132, %s2131, 31
          %s2134 = smul.addr %s2133, 8
          %s2135 = scalar_lea.vmem %s3, %s2134
        $region48: #{tpu_custom_call.1} parent=43 // pred_fallthru
          _
      $region44: #{tpu_custom_call.1} parent=5 // pred_fallthru
        _
    $region6: #{tpu_custom_call.1} parent=1 // loop_footer
      %s14 = sadd.s32 1, %s10
    $region7: #{tpu_custom_call.1} parent=1 // loop_footer_branch
      %9 = sbr.rel target = $region3
    $region8: #{tpu_custom_call.1} parent=1 // loop_exit
      _
    %2136 = vsyncpa [#allocation3], 1
    %s2137 = scalar_lea.sflag [#allocation3], 1
    %2138 = vsyncpa %s2137, 1

</llo_original>
